<compile_context>
chip_gen: v7x
topology: tpu7x:2x2x1
jax: 0.10.0
libtpu: 0.0.40
codegen_flags: <defaults>
</compile_context>

<pallas_src>
import numpy as np
import jax
import jax.numpy as jnp
from jax.experimental import pallas as pl
from jax.experimental.pallas import tpu as pltpu

# ------------------------------ config (small, deterministic) ------------------------------
B, L, S = 2, 8, 12          # batch, query length, key/value length
D, H = 32, 4                # d_model, n_heads
DH = D // H                 # d_keys = d_values = head dim
_SCALE = float(1.0 / np.sqrt(DH))


def _mm(a, b):
    return jnp.dot(a, b, preferred_element_type=jnp.float32)


# ----------------------------------------- kernel ------------------------------------------
def attention_layer_kernel(q_ref, k_ref, v_ref, w_ref, b_ref, o_ref):
    """One grid step handles BB batch elements.

    w_ref: (4, D, D) = [Wq, Wk, Wv, Wo]  (x @ W layout)
    b_ref: (4, 1, D) = [bq, bk, bv, bo]
    """
    BB = q_ref.shape[0]

    # input projections: one MXU matmul each over the flattened (BB*T, D) slab
    q = _mm(q_ref[...].reshape(BB * L, D), w_ref[0]) + b_ref[0]        # (BB*L, D)
    k = _mm(k_ref[...].reshape(BB * S, D), w_ref[1]) + b_ref[1]        # (BB*S, D)
    v = _mm(v_ref[...].reshape(BB * S, D), w_ref[2]) + b_ref[2]        # (BB*S, D)

    q3 = q.reshape(BB, L, D)
    k3 = k.reshape(BB, S, D)
    v3 = v.reshape(BB, S, D)

    # split heads once: (BB, T, D) -> (H*BB, T, DH); every head lives in ONE batched contraction
    def heads(x, t):
        return jnp.concatenate(
            [x[None, :, :, h * DH:(h + 1) * DH] for h in range(H)], axis=0
        ).reshape(H * BB, t, DH)

    qh = heads(q3, L)
    kh = heads(k3, S)
    vh = heads(v3, S)

    # ONE batched score matmul + ONE softmax over all (batch, head) pairs
    s = jnp.einsum('bqd,bkd->bqk', qh, kh,
                   preferred_element_type=jnp.float32) * _SCALE        # (H*BB, L, S)
    s = s - jnp.max(s, axis=-1, keepdims=True)
    p = jnp.exp(s)
    p = p * pl.reciprocal(jnp.sum(p, axis=-1, keepdims=True), approx=True)

    # ONE batched PV matmul, merge heads along lanes, ONE output projection matmul
    oh = jnp.einsum('bqk,bkd->bqd', p, vh,
                    preferred_element_type=jnp.float32)                # (H*BB, L, DH)
    oh = oh.reshape(H, BB, L, DH)
    merged = jnp.concatenate([oh[h] for h in range(H)], axis=-1)       # (BB, L, D)
    out = _mm(merged.reshape(BB * L, D), w_ref[3]) + b_ref[3]          # (BB*L, D)
    o_ref[...] = out.reshape(BB, L, D)


# ----------------------------------------- wrapper -----------------------------------------
def _dual_tensorcore():
    # v7x has 2 TensorCores per chip; v5e / v6e have 1. Heuristic on the device kind string.
    try:
        kind = jax.devices()[0].device_kind.lower()
    except Exception:
        return False
    return "7" in kind


def pallas_attention_layer(queries, keys, values, w_all, b_all, *, batch_per_step=None):
    Bq = queries.shape[0]

    if batch_per_step is None:
        # dual-TC (v7x): one batch element per grid step -> 2-way core parallelism.
        # single-TC (v5e/v6e): fold the whole batch into a single grid step.
        batch_per_step = 1 if _dual_tensorcore() else Bq
    if Bq % batch_per_step != 0:
        batch_per_step = 1
    BB = batch_per_step
    grid = (Bq // BB,)

    in_specs = [
        pl.BlockSpec((BB, L, D), lambda b: (b, 0, 0)),     # queries
        pl.BlockSpec((BB, S, D), lambda b: (b, 0, 0)),     # keys
        pl.BlockSpec((BB, S, D), lambda b: (b, 0, 0)),     # values
        pl.BlockSpec((4, D, D), lambda b: (0, 0, 0)),      # packed weights
        pl.BlockSpec((4, 1, D), lambda b: (0, 0, 0)),      # packed biases
    ]
    out_specs = pl.BlockSpec((BB, L, D), lambda b: (b, 0, 0))
    out_shape = jax.ShapeDtypeStruct((Bq, L, D), jnp.float32)

    return pl.pallas_call(
        attention_layer_kernel,
        grid=grid,
        in_specs=in_specs,
        out_specs=out_specs,
        out_shape=out_shape,
        compiler_params=pltpu.CompilerParams(dimension_semantics=("parallel",)),
    )(queries, keys, values, w_all, b_all)


# --------------------------------- pure-JAX reference (check) ------------------------------
def _ref(q, k, v, w, b):
    Bq, Lq, _ = q.shape
    Sk = k.shape[1]
    qp = (q @ w[0] + b[0]).reshape(Bq, Lq, H, DH)
    kp = (k @ w[1] + b[1]).reshape(Bq, Sk, H, DH)
    vp = (v @ w[2] + b[2]).reshape(Bq, Sk, H, DH)
    s = jnp.einsum('blhe,bshe->bhls', qp, kp) * _SCALE
    a = jax.nn.softmax(s, axis=-1)
    o = jnp.einsum('bhls,bshd->blhd', a, vp).reshape(Bq, Lq, D)
    return o @ w[3] + b[3]


# -------------------------------------------- main ------------------------------------------
if __name__ == "__main__":
    key = jax.random.PRNGKey(0)
    ks = jax.random.split(key, 5)

    # packed parameters: [Wq, Wk, Wv, Wo] and [bq, bk, bv, bo]
    w_all = 0.1 * jax.random.normal(ks[0], (4, D, D), jnp.float32)
    b_all = 0.1 * jax.random.normal(ks[1], (4, 1, D), jnp.float32)

    # inputs: queries (B, L, D), keys / values (B, S, D); attn_mask = None
    queries = jax.random.normal(ks[2], (B, L, D), jnp.float32)
    keys = jax.random.normal(ks[3], (B, S, D), jnp.float32)
    values = jax.random.normal(ks[4], (B, S, D), jnp.float32)

    out = pallas_attention_layer(queries, keys, values, w_all, b_all)
    jax.block_until_ready(out)

    ref = _ref(queries, keys, values, w_all, b_all)
    # tolerance loosened slightly to cover pl.reciprocal(approx=True) in the softmax denominator
    assert np.allclose(np.asarray(out), np.asarray(ref), rtol=5e-3, atol=5e-3)
    print("KERNEL_OK")
</pallas_src>

<mosaic_0001>
module attributes {stable_mosaic.version = 11 : i64} {
  func.func @attention_layer_kernel(%arg0: i32, %arg1: memref<2x8x32xf32, #tpu.memory_space<vmem>>, %arg2: memref<2x12x32xf32, #tpu.memory_space<vmem>>, %arg3: memref<2x12x32xf32, #tpu.memory_space<vmem>>, %arg4: memref<4x32x32xf32, #tpu.memory_space<vmem>>, %arg5: memref<4x1x32xf32, #tpu.memory_space<vmem>>, %arg6: memref<2x8x32xf32, #tpu.memory_space<vmem>>) attributes {dimension_semantics = [#tpu.dimension_semantics<parallel>], iteration_bounds = array<i64: 1>, scalar_prefetch = 0 : i64, scratch_operands = 0 : i64, tpu.core_type = #tpu.core_type<tc>, window_params = [{transform_indices = @transform_0, window_bounds = array<i64: 2, 8, 32>}, {transform_indices = @transform_1, window_bounds = array<i64: 2, 12, 32>}, {transform_indices = @transform_2, window_bounds = array<i64: 2, 12, 32>}, {pipeline_mode = #tpu.pipeline_mode<synchronous>, transform_indices = @transform_3, window_bounds = array<i64: 4, 32, 32>}, {pipeline_mode = #tpu.pipeline_mode<synchronous>, transform_indices = @transform_4, window_bounds = array<i64: 4, 1, 32>}, {transform_indices = @transform_5, window_bounds = array<i64: 2, 8, 32>}]} {
    %c0 = arith.constant 0 : index
    %c0_0 = arith.constant 0 : index
    %c0_1 = arith.constant 0 : index
    %0 = vector.load %arg1[%c0, %c0_0, %c0_1] : memref<2x8x32xf32, #tpu.memory_space<vmem>>, vector<2x8x32xf32>
    %1 = vector.shape_cast %0 : vector<2x8x32xf32> to vector<16x32xf32>
    %c0_2 = arith.constant 0 : index
    %c0_3 = arith.constant 0 : index
    %c0_4 = arith.constant 0 : index
    %2 = vector.load %arg4[%c0_2, %c0_3, %c0_4] : memref<4x32x32xf32, #tpu.memory_space<vmem>>, vector<1x32x32xf32>
    %3 = vector.shape_cast %2 : vector<1x32x32xf32> to vector<32x32xf32>
    %cst = arith.constant dense<0.000000e+00> : vector<16x32xf32>
    %4 = tpu.matmul %1, %3, %cst {dimension_numbers = #tpu.dot_dimension_numbers<[1], [0], [0], [1], [0, 0, 1, 1], [], []>} : vector<16x32xf32>, vector<32x32xf32>, vector<16x32xf32> -> vector<16x32xf32>
    %c0_5 = arith.constant 0 : index
    %c0_6 = arith.constant 0 : index
    %c0_7 = arith.constant 0 : index
    %5 = vector.load %arg5[%c0_5, %c0_6, %c0_7] : memref<4x1x32xf32, #tpu.memory_space<vmem>>, vector<1x1x32xf32>
    %6 = vector.shape_cast %5 : vector<1x1x32xf32> to vector<1x32xf32>
    %7 = vector.broadcast %6 : vector<1x32xf32> to vector<16x32xf32>
    %8 = arith.addf %4, %7 : vector<16x32xf32>
    %c0_8 = arith.constant 0 : index
    %c0_9 = arith.constant 0 : index
    %c0_10 = arith.constant 0 : index
    %9 = vector.load %arg2[%c0_8, %c0_9, %c0_10] : memref<2x12x32xf32, #tpu.memory_space<vmem>>, vector<2x12x32xf32>
    %10 = vector.shape_cast %9 : vector<2x12x32xf32> to vector<24x32xf32>
    %c1 = arith.constant 1 : index
    %c0_11 = arith.constant 0 : index
    %c0_12 = arith.constant 0 : index
    %11 = vector.load %arg4[%c1, %c0_11, %c0_12] : memref<4x32x32xf32, #tpu.memory_space<vmem>>, vector<1x32x32xf32>
    %12 = vector.shape_cast %11 : vector<1x32x32xf32> to vector<32x32xf32>
    %cst_13 = arith.constant dense<0.000000e+00> : vector<24x32xf32>
    %13 = tpu.matmul %10, %12, %cst_13 {dimension_numbers = #tpu.dot_dimension_numbers<[1], [0], [0], [1], [0, 0, 1, 1], [], []>} : vector<24x32xf32>, vector<32x32xf32>, vector<24x32xf32> -> vector<24x32xf32>
    %c1_14 = arith.constant 1 : index
    %c0_15 = arith.constant 0 : index
    %c0_16 = arith.constant 0 : index
    %14 = vector.load %arg5[%c1_14, %c0_15, %c0_16] : memref<4x1x32xf32, #tpu.memory_space<vmem>>, vector<1x1x32xf32>
    %15 = vector.shape_cast %14 : vector<1x1x32xf32> to vector<1x32xf32>
    %16 = vector.broadcast %15 : vector<1x32xf32> to vector<24x32xf32>
    %17 = arith.addf %13, %16 : vector<24x32xf32>
    %c0_17 = arith.constant 0 : index
    %c0_18 = arith.constant 0 : index
    %c0_19 = arith.constant 0 : index
    %18 = vector.load %arg3[%c0_17, %c0_18, %c0_19] : memref<2x12x32xf32, #tpu.memory_space<vmem>>, vector<2x12x32xf32>
    %19 = vector.shape_cast %18 : vector<2x12x32xf32> to vector<24x32xf32>
    %c2 = arith.constant 2 : index
    %c0_20 = arith.constant 0 : index
    %c0_21 = arith.constant 0 : index
    %20 = vector.load %arg4[%c2, %c0_20, %c0_21] : memref<4x32x32xf32, #tpu.memory_space<vmem>>, vector<1x32x32xf32>
    %21 = vector.shape_cast %20 : vector<1x32x32xf32> to vector<32x32xf32>
    %cst_22 = arith.constant dense<0.000000e+00> : vector<24x32xf32>
    %22 = tpu.matmul %19, %21, %cst_22 {dimension_numbers = #tpu.dot_dimension_numbers<[1], [0], [0], [1], [0, 0, 1, 1], [], []>} : vector<24x32xf32>, vector<32x32xf32>, vector<24x32xf32> -> vector<24x32xf32>
    %c2_23 = arith.constant 2 : index
    %c0_24 = arith.constant 0 : index
    %c0_25 = arith.constant 0 : index
    %23 = vector.load %arg5[%c2_23, %c0_24, %c0_25] : memref<4x1x32xf32, #tpu.memory_space<vmem>>, vector<1x1x32xf32>
    %24 = vector.shape_cast %23 : vector<1x1x32xf32> to vector<1x32xf32>
    %25 = vector.broadcast %24 : vector<1x32xf32> to vector<24x32xf32>
    %26 = arith.addf %22, %25 : vector<24x32xf32>
    %27 = vector.shape_cast %8 : vector<16x32xf32> to vector<2x8x32xf32>
    %28 = vector.shape_cast %17 : vector<24x32xf32> to vector<2x12x32xf32>
    %29 = vector.shape_cast %26 : vector<24x32xf32> to vector<2x12x32xf32>
    %30 = vector.extract_strided_slice %27 {offsets = [0, 0, 0], sizes = [2, 8, 8], strides = [1, 1, 1]} : vector<2x8x32xf32> to vector<2x8x8xf32>
    %31 = vector.shape_cast %30 : vector<2x8x8xf32> to vector<1x2x8x8xf32>
    %32 = vector.extract_strided_slice %27 {offsets = [0, 0, 8], sizes = [2, 8, 8], strides = [1, 1, 1]} : vector<2x8x32xf32> to vector<2x8x8xf32>
    %33 = vector.shape_cast %32 : vector<2x8x8xf32> to vector<1x2x8x8xf32>
    %34 = vector.extract_strided_slice %27 {offsets = [0, 0, 16], sizes = [2, 8, 8], strides = [1, 1, 1]} : vector<2x8x32xf32> to vector<2x8x8xf32>
    %35 = vector.shape_cast %34 : vector<2x8x8xf32> to vector<1x2x8x8xf32>
    %36 = vector.extract_strided_slice %27 {offsets = [0, 0, 24], sizes = [2, 8, 8], strides = [1, 1, 1]} : vector<2x8x32xf32> to vector<2x8x8xf32>
    %37 = vector.shape_cast %36 : vector<2x8x8xf32> to vector<1x2x8x8xf32>
    %38 = tpu.concatenate %31, %33, %35, %37 in 0 : vector<1x2x8x8xf32>, vector<1x2x8x8xf32>, vector<1x2x8x8xf32>, vector<1x2x8x8xf32> -> vector<4x2x8x8xf32>
    %39 = vector.shape_cast %38 : vector<4x2x8x8xf32> to vector<8x8x8xf32>
    %40 = vector.extract_strided_slice %28 {offsets = [0, 0, 0], sizes = [2, 12, 8], strides = [1, 1, 1]} : vector<2x12x32xf32> to vector<2x12x8xf32>
    %41 = vector.shape_cast %40 : vector<2x12x8xf32> to vector<1x2x12x8xf32>
    %42 = vector.extract_strided_slice %28 {offsets = [0, 0, 8], sizes = [2, 12, 8], strides = [1, 1, 1]} : vector<2x12x32xf32> to vector<2x12x8xf32>
    %43 = vector.shape_cast %42 : vector<2x12x8xf32> to vector<1x2x12x8xf32>
    %44 = vector.extract_strided_slice %28 {offsets = [0, 0, 16], sizes = [2, 12, 8], strides = [1, 1, 1]} : vector<2x12x32xf32> to vector<2x12x8xf32>
    %45 = vector.shape_cast %44 : vector<2x12x8xf32> to vector<1x2x12x8xf32>
    %46 = vector.extract_strided_slice %28 {offsets = [0, 0, 24], sizes = [2, 12, 8], strides = [1, 1, 1]} : vector<2x12x32xf32> to vector<2x12x8xf32>
    %47 = vector.shape_cast %46 : vector<2x12x8xf32> to vector<1x2x12x8xf32>
    %48 = tpu.concatenate %41, %43, %45, %47 in 0 : vector<1x2x12x8xf32>, vector<1x2x12x8xf32>, vector<1x2x12x8xf32>, vector<1x2x12x8xf32> -> vector<4x2x12x8xf32>
    %49 = vector.shape_cast %48 : vector<4x2x12x8xf32> to vector<8x12x8xf32>
    %50 = vector.extract_strided_slice %29 {offsets = [0, 0, 0], sizes = [2, 12, 8], strides = [1, 1, 1]} : vector<2x12x32xf32> to vector<2x12x8xf32>
    %51 = vector.shape_cast %50 : vector<2x12x8xf32> to vector<1x2x12x8xf32>
    %52 = vector.extract_strided_slice %29 {offsets = [0, 0, 8], sizes = [2, 12, 8], strides = [1, 1, 1]} : vector<2x12x32xf32> to vector<2x12x8xf32>
    %53 = vector.shape_cast %52 : vector<2x12x8xf32> to vector<1x2x12x8xf32>
    %54 = vector.extract_strided_slice %29 {offsets = [0, 0, 16], sizes = [2, 12, 8], strides = [1, 1, 1]} : vector<2x12x32xf32> to vector<2x12x8xf32>
    %55 = vector.shape_cast %54 : vector<2x12x8xf32> to vector<1x2x12x8xf32>
    %56 = vector.extract_strided_slice %29 {offsets = [0, 0, 24], sizes = [2, 12, 8], strides = [1, 1, 1]} : vector<2x12x32xf32> to vector<2x12x8xf32>
    %57 = vector.shape_cast %56 : vector<2x12x8xf32> to vector<1x2x12x8xf32>
    %58 = tpu.concatenate %51, %53, %55, %57 in 0 : vector<1x2x12x8xf32>, vector<1x2x12x8xf32>, vector<1x2x12x8xf32>, vector<1x2x12x8xf32> -> vector<4x2x12x8xf32>
    %59 = vector.shape_cast %58 : vector<4x2x12x8xf32> to vector<8x12x8xf32>
    "tpu.trace_start"() <{level = 10 : i32, message = "bqd,bkd->bqk"}> : () -> ()
    %cst_26 = arith.constant dense<0.000000e+00> : vector<8x8x12xf32>
    %60 = tpu.matmul %39, %49, %cst_26 {dimension_numbers = #tpu.dot_dimension_numbers<[2], [2], [1], [1], [0, 0, 0, 1, 1, 1], [0], [0]>} : vector<8x8x8xf32>, vector<8x12x8xf32>, vector<8x8x12xf32> -> vector<8x8x12xf32>
    "tpu.trace_stop"() : () -> ()
    %cst_27 = arith.constant 0.353553385 : f32
    %61 = vector.broadcast %cst_27 : f32 to vector<8x8x12xf32>
    %62 = arith.mulf %60, %61 : vector<8x8x12xf32>
    %cst_28 = arith.constant dense<0xFF800000> : vector<8x8xf32>
    %63 = vector.multi_reduction <maximumf>, %62, %cst_28 [2] : vector<8x8x12xf32> to vector<8x8xf32>
    %64 = vector.shape_cast %63 : vector<8x8xf32> to vector<8x8x1xf32>
    %65 = vector.broadcast %64 : vector<8x8x1xf32> to vector<8x8x12xf32>
    %66 = arith.subf %62, %65 : vector<8x8x12xf32>
    %67 = math.exp %66 : vector<8x8x12xf32>
    %cst_29 = arith.constant dense<0.000000e+00> : vector<8x8xf32>
    %68 = vector.multi_reduction <add>, %67, %cst_29 [2] : vector<8x8x12xf32> to vector<8x8xf32>
    %69 = vector.shape_cast %68 : vector<8x8xf32> to vector<8x8x1xf32>
    %70 = tpu.reciprocal %69 {approx = true} : vector<8x8x1xf32> -> vector<8x8x1xf32>
    %71 = vector.broadcast %70 : vector<8x8x1xf32> to vector<8x8x12xf32>
    %72 = arith.mulf %67, %71 : vector<8x8x12xf32>
    "tpu.trace_start"() <{level = 10 : i32, message = "bqk,bkd->bqd"}> : () -> ()
    %cst_30 = arith.constant dense<0.000000e+00> : vector<8x8x8xf32>
    %73 = tpu.matmul %72, %59, %cst_30 {dimension_numbers = #tpu.dot_dimension_numbers<[2], [1], [1], [2], [0, 0, 0, 1, 1, 2], [0], [0]>} : vector<8x8x12xf32>, vector<8x12x8xf32>, vector<8x8x8xf32> -> vector<8x8x8xf32>
    "tpu.trace_stop"() : () -> ()
    %74 = vector.shape_cast %73 : vector<8x8x8xf32> to vector<4x2x8x8xf32>
    %75 = vector.extract_strided_slice %74 {offsets = [0, 0, 0, 0], sizes = [1, 2, 8, 8], strides = [1, 1, 1, 1]} : vector<4x2x8x8xf32> to vector<1x2x8x8xf32>
    %76 = vector.shape_cast %75 : vector<1x2x8x8xf32> to vector<2x8x8xf32>
    %77 = vector.extract_strided_slice %74 {offsets = [1, 0, 0, 0], sizes = [1, 2, 8, 8], strides = [1, 1, 1, 1]} : vector<4x2x8x8xf32> to vector<1x2x8x8xf32>
    %78 = vector.shape_cast %77 : vector<1x2x8x8xf32> to vector<2x8x8xf32>
    %79 = vector.extract_strided_slice %74 {offsets = [2, 0, 0, 0], sizes = [1, 2, 8, 8], strides = [1, 1, 1, 1]} : vector<4x2x8x8xf32> to vector<1x2x8x8xf32>
    %80 = vector.shape_cast %79 : vector<1x2x8x8xf32> to vector<2x8x8xf32>
    %81 = vector.extract_strided_slice %74 {offsets = [3, 0, 0, 0], sizes = [1, 2, 8, 8], strides = [1, 1, 1, 1]} : vector<4x2x8x8xf32> to vector<1x2x8x8xf32>
    %82 = vector.shape_cast %81 : vector<1x2x8x8xf32> to vector<2x8x8xf32>
    %83 = tpu.concatenate %76, %78, %80, %82 in 2 : vector<2x8x8xf32>, vector<2x8x8xf32>, vector<2x8x8xf32>, vector<2x8x8xf32> -> vector<2x8x32xf32>
    %84 = vector.shape_cast %83 : vector<2x8x32xf32> to vector<16x32xf32>
    %c3 = arith.constant 3 : index
    %c0_31 = arith.constant 0 : index
    %c0_32 = arith.constant 0 : index
    %85 = vector.load %arg4[%c3, %c0_31, %c0_32] : memref<4x32x32xf32, #tpu.memory_space<vmem>>, vector<1x32x32xf32>
    %86 = vector.shape_cast %85 : vector<1x32x32xf32> to vector<32x32xf32>
    %cst_33 = arith.constant dense<0.000000e+00> : vector<16x32xf32>
    %87 = tpu.matmul %84, %86, %cst_33 {dimension_numbers = #tpu.dot_dimension_numbers<[1], [0], [0], [1], [0, 0, 1, 1], [], []>} : vector<16x32xf32>, vector<32x32xf32>, vector<16x32xf32> -> vector<16x32xf32>
    %c3_34 = arith.constant 3 : index
    %c0_35 = arith.constant 0 : index
    %c0_36 = arith.constant 0 : index
    %88 = vector.load %arg5[%c3_34, %c0_35, %c0_36] : memref<4x1x32xf32, #tpu.memory_space<vmem>>, vector<1x1x32xf32>
    %89 = vector.shape_cast %88 : vector<1x1x32xf32> to vector<1x32xf32>
    %90 = vector.broadcast %89 : vector<1x32xf32> to vector<16x32xf32>
    %91 = arith.addf %87, %90 : vector<16x32xf32>
    %92 = vector.shape_cast %91 : vector<16x32xf32> to vector<2x8x32xf32>
    %c0_37 = arith.constant 0 : index
    %c0_38 = arith.constant 0 : index
    %c0_39 = arith.constant 0 : index
    %93 = vector.load %arg6[%c0_37, %c0_38, %c0_39] : memref<2x8x32xf32, #tpu.memory_space<vmem>>, vector<2x8x32xf32>
    tpu.vector_store %arg6[%c0_37, %c0_38, %c0_39], %92 {strides = array<i32>} : memref<2x8x32xf32, #tpu.memory_space<vmem>>, vector<2x8x32xf32>,
    return
  }
  func.func @transform_0(%arg0: i32) -> (i32, i32, i32) {
    %c0_i32 = arith.constant 0 : i32
    %c0_i32_0 = arith.constant 0 : i32
    %c0_i32_1 = arith.constant 0 : i32
    return %arg0, %c0_i32, %c0_i32_0 : i32, i32, i32
  }
  func.func @transform_1(%arg0: i32) -> (i32, i32, i32) {
    %c0_i32 = arith.constant 0 : i32
    %c0_i32_0 = arith.constant 0 : i32
    %c0_i32_1 = arith.constant 0 : i32
    return %arg0, %c0_i32, %c0_i32_0 : i32, i32, i32
  }
  func.func @transform_2(%arg0: i32) -> (i32, i32, i32) {
    %c0_i32 = arith.constant 0 : i32
    %c0_i32_0 = arith.constant 0 : i32
    %c0_i32_1 = arith.constant 0 : i32
    return %arg0, %c0_i32, %c0_i32_0 : i32, i32, i32
  }
  func.func @transform_3(%arg0: i32) -> (i32, i32, i32) {
    %c0_i32 = arith.constant 0 : i32
    %c0_i32_0 = arith.constant 0 : i32
    %c0_i32_1 = arith.constant 0 : i32
    %c0_i32_2 = arith.constant 0 : i32
    return %c0_i32, %c0_i32_0, %c0_i32_1 : i32, i32, i32
  }
  func.func @transform_4(%arg0: i32) -> (i32, i32, i32) {
    %c0_i32 = arith.constant 0 : i32
    %c0_i32_0 = arith.constant 0 : i32
    %c0_i32_1 = arith.constant 0 : i32
    %c0_i32_2 = arith.constant 0 : i32
    return %c0_i32, %c0_i32_0, %c0_i32_1 : i32, i32, i32
  }
  func.func @transform_5(%arg0: i32) -> (i32, i32, i32) {
    %c0_i32 = arith.constant 0 : i32
    %c0_i32_0 = arith.constant 0 : i32
    %c0_i32_1 = arith.constant 0 : i32
    return %arg0, %c0_i32, %c0_i32_0 : i32, i32, i32
  }
}

</mosaic_0001>

<llo_original>
// kernel: tpu_custom_call.1
$region0: #{tpu_custom_call.1}
  #allocation0 [shape = 'u32[]', space=smem, size = 0x4, offset = 0x4, fixed_abs, tag = 'smem constant byte address 0x4 - core index']
  #allocation1 [shape = 'u32[144,128]{1,0:T(1,128)}', space=vmem, size = 0x12000, scoped, tag = 'internal scratch']
  %s0 = inlined_call_operand.vmem [shape: f32[2,8,32], index: 0, kind: input, shape index: {}]
  %s1 = inlined_call_operand.vmem [shape: f32[2,12,32], index: 1, kind: input, shape index: {}]
  %s2 = inlined_call_operand.vmem [shape: f32[2,12,32], index: 2, kind: input, shape index: {}]
  %s3 = inlined_call_operand.hbm [shape: f32[4,32,32], index: 3, kind: input, shape index: {}]
  %s4 = inlined_call_operand.vmem [shape: f32[4,1,32], index: 4, kind: input, shape index: {}]
  %s5 = inlined_call_operand.hbm [shape: f32[2,8,32], index: 5, kind: output, shape index: {}]
  %s6 = sld [smem:[#allocation0]]
  $region34: #{tpu_custom_call.1} parent=0
    _
  %s8 = ssub.s32 1, %s6
  %s9 = scalar_select 0, %s8, %s6
  $region1: #{tpu_custom_call.1} parent=0
    #allocation2 [shape = 'u8[65536]{0}', space=vmem, size = 0x10000, scoped, tag = 'input window, operand 3, single buffered']
    #allocation3 [shape = 's32[1]{0}', space=sflag, size = 0x4, scoped, tag = 'scoped memory for tpu_custom_call.1']
    #allocation4 [shape = 's32[1]{0}', space=sflag, size = 0x4, scoped, tag = 'scoped memory for tpu_custom_call.1']
    #allocation5 [shape = 'u8[8192]{0}', space=vmem, size = 0x2000, scoped, tag = 'output window, operand 0, single buffered']
    %10 = vsyncpa [#allocation3], 0
    %11 = vsyncpa [#allocation4], 0
    // Predicated region
    $region2: #{tpu_custom_call.1} parent=1 // pred_check
      _
    $region3: #{tpu_custom_call.1} parent=1 // pred_check_branch
      %13 = sbr.rel (0) target = $region5
    $region4: #{tpu_custom_call.1} parent=1 // pred_region
      _
    $region5: #{tpu_custom_call.1} parent=1 // pred_fallthru
      _
    // Predicated region
    $region6: #{tpu_custom_call.1} parent=1 // pred_check
      _
    $region7: #{tpu_custom_call.1} parent=1 // pred_check_branch
      %15 = sbr.rel (0) target = $region9
    $region8: #{tpu_custom_call.1} parent=1 // pred_region
      _
    $region9: #{tpu_custom_call.1} parent=1 // pred_fallthru
      _
    // Predicated region
    $region10: #{tpu_custom_call.1} parent=1 // pred_check
      _
    $region11: #{tpu_custom_call.1} parent=1 // pred_check_branch
      %17 = sbr.rel (0) target = $region13
    $region12: #{tpu_custom_call.1} parent=1 // pred_region
      _
    $region13: #{tpu_custom_call.1} parent=1 // pred_fallthru
      _
    // Predicated region
    $region14: #{tpu_custom_call.1} parent=1 // pred_check
      _
    $region15: #{tpu_custom_call.1} parent=1 // pred_check_branch
      %19 = sbr.rel (0) target = $region17
    $region16: #{tpu_custom_call.1} parent=1 // pred_region
      %s21 = ssub.s32 2048, 2048
      %22 = vsyncadd [#allocation3], %s21
      %s23 = sshll.u32 [#allocation2], 4
      %s24 = int_to_ptr.vmem [resolvable:$true] %s23
      %29 = dma.hbm_to_vmem [thread:$0]  %s3, 2048, %s24, [#allocation3], 128, 128, 8
    $region17: #{tpu_custom_call.1} parent=1 // pred_fallthru
      _
    // Predicated region
    $region18: #{tpu_custom_call.1} parent=1 // pred_check
      _
    $region19: #{tpu_custom_call.1} parent=1 // pred_check_branch
      %31 = sbr.rel (0) target = $region21
    $region20: #{tpu_custom_call.1} parent=1 // pred_region
      _
    $region21: #{tpu_custom_call.1} parent=1 // pred_fallthru
      _
    // Predicated region
    $region22: #{tpu_custom_call.1} parent=1 // pred_check
      _
    $region23: #{tpu_custom_call.1} parent=1 // pred_check_branch
      %33 = sbr.rel (0) target = $region25
    $region24: #{tpu_custom_call.1} parent=1 // pred_region
      %34 = dma.done [#allocation3], 2048
    $region25: #{tpu_custom_call.1} parent=1 // pred_fallthru
      _
    %v35 = vld [vmem:[%s0] sm:$0xff]
    %v36 = vld [vmem:[%s0 + $0x8] sm:$0xff]
    %v37 = vld [vmem:[#allocation2] sm:$0xff]
    %v38 = vld [vmem:[#allocation2 + $0x8] sm:$0xff]
    %v39 = vld [vmem:[#allocation2 + $0x10] sm:$0xff]
    %v40 = vld [vmem:[#allocation2 + $0x18] sm:$0xff]
    %v41 = vld [vmem:[%s4] sm:$0x1]
    %v43 = vlaneseq
    %v44 = vshrl.u32 %v43, 7
    %v45 = vsub.s32 0, %v44
    %v46 = vrot.slane %v41, %v45
    %vm48 = vcmask 261120
    %v50 = vsel %vm48, %v35, 0
    %v53 = vsel %vm48, %v36, 0
    %55 = vmatprep.subr.mxu0 0.0
    %56 = vmatpush1.msra.mxu0 %v37
    %57 = vmatprep.subr.mxu0 0.0
    %58 = vmatpush1.msra.mxu0 %v38
    %59 = vmatprep.subr.mxu0 0.0
    %60 = vmatpush1.msra.mxu0 %v39
    %61 = vmatprep.subr.mxu0 0.0
    %62 = vmatpush1.msra.mxu0 %v40
    %63 = vmatprep.subr.mxu0 0.0
    %64 = vmatpush1.msra.mxu0 0.0
    %65 = vmatprep.subr.mxu0 0.0
    %66 = vmatpush1.msra.mxu0 0.0
    %67 = vmatprep.subr.mxu0 0.0
    %68 = vmatpush1.msra.mxu0 0.0
    %69 = vmatprep.subr.mxu0 0.0
    %70 = vmatpush1.msra.mxu0 0.0
    %71 = vmatprep.subr.mxu0 0.0
    %72 = vmatpush1.msra.mxu0 0.0
    %73 = vmatprep.subr.mxu0 0.0
    %74 = vmatpush1.msra.mxu0 0.0
    %75 = vmatprep.subr.mxu0 0.0
    %76 = vmatpush1.msra.mxu0 0.0
    %77 = vmatprep.subr.mxu0 0.0
    %78 = vmatpush1.msra.mxu0 0.0
    %79 = vmatprep.subr.mxu0 0.0
    %80 = vmatpush1.msra.mxu0 0.0
    %81 = vmatprep.subr.mxu0 0.0
    %82 = vmatpush1.msra.mxu0 0.0
    %83 = vmatprep.subr.mxu0 0.0
    %84 = vmatpush1.msra.mxu0 0.0
    %85 = vmatprep.subr.mxu0 0.0
    %86 = vmatpush1.msra.mxu0 0.0
    %87 = vmatprep.subr.mxu0 0.0
    %88 = vmatpush1.msra.mxu0 0.0
    %89 = vmatprep.subr.mxu0 0.0
    %90 = vmatpush1.msra.mxu0 0.0
    %91 = vmatprep.subr.mxu0 0.0
    %92 = vmatpush1.msra.mxu0 0.0
    %93 = vmatprep.subr.mxu0 0.0
    %94 = vmatpush1.msra.mxu0 0.0
    %95 = vmatprep.subr.mxu0 0.0
    %96 = vmatpush1.msra.mxu0 0.0
    %97 = vmatprep.subr.mxu0 0.0
    %98 = vmatpush1.msra.mxu0 0.0
    %99 = vmatprep.subr.mxu0 0.0
    %100 = vmatpush1.msra.mxu0 0.0
    %101 = vmatprep.subr.mxu0 0.0
    %102 = vmatpush1.msra.mxu0 0.0
    %103 = vmatprep.subr.mxu0 0.0
    %104 = vmatpush1.msra.mxu0 0.0
    %105 = vmatprep.subr.mxu0 0.0
    %106 = vmatpush1.msra.mxu0 0.0
    %107 = vmatprep.subr.mxu0 0.0
    %108 = vmatpush1.msra.mxu0 0.0
    %109 = vmatprep.subr.mxu0 0.0
    %110 = vmatpush1.msra.mxu0 0.0
    %111 = vmatprep.subr.mxu0 0.0
    %112 = vmatpush1.msra.mxu0 0.0
    %113 = vmatprep.subr.mxu0 0.0
    %114 = vmatpush1.msra.mxu0 0.0
    %115 = vmatprep.subr.mxu0 0.0
    %116 = vmatpush1.msra.mxu0 0.0
    %117 = vmatprep.subr.mxu0 0.0
    %118 = vmatpush1.msra.mxu0 0.0
    %119 = vmatprep.mubr.f32.mxu0 0.0
    %120 = vmatmul.mubr.f32.gmra.mrb[0].mxu0 %v50
    %v121 = vpop.f32.mrb[0].mxu0
    %v122 = vadd.f32 %v46, %v121
    %v123 = vpop.f32.mrb[0].mxu0
    %124 = vmatprep.mubr.f32.mxu0 0.0
    %125 = vmatmul.mubr.f32.gmra.mrb[0].mxu0 %v53
    %v126 = vpop.f32.mrb[0].mxu0
    %v127 = vadd.f32 %v46, %v126
    %v128 = vpop.f32.mrb[0].mxu0
    %129 = vdwg.mxu0
    %v130 = vld [vmem:[%s1] sm:$0xff]
    %v131 = vld [vmem:[%s1 + $0x8] sm:$0xf]
    %v132 = vld [vmem:[%s1 + $0x10] sm:$0xff]
    %v133 = vld [vmem:[%s1 + $0x18] sm:$0xf]
    %v138 = vcombine.high %v130, %v130
    %v139 = vcombine.high %v132, %v132
    %s140 = scalar_lea.vmem [#allocation2], 32
    %v141 = vld [vmem:[%s140] sm:$0xff]
    %v142 = vld [vmem:[%s140 + $0x8] sm:$0xff]
    %v143 = vld [vmem:[%s140 + $0x10] sm:$0xff]
    %v144 = vld [vmem:[%s140 + $0x18] sm:$0xff]
    %s145 = scalar_lea.vmem %s4, 1
    %v146 = vld [vmem:[%s145] sm:$0x1]
    %v148 = vlaneseq
    %v149 = vshrl.u32 %v148, 7
    %v150 = vsub.s32 0, %v149
    %v151 = vrot.slane %v146, %v150
    %v153 = vcombine.low %v130, %v138
    %v154 = vcombine.low %v131, %v132
    %v155 = vcombine.low %v139, %v133
    %v156 = vsel %vm48, %v153, 0
    %v158 = vsel %vm48, %v154, 0
    %v160 = vsel %vm48, %v155, 0
    %162 = vmatprep.subr.mxu0 0.0
    %163 = vmatpush1.msra.mxu0 %v141
    %164 = vmatprep.subr.mxu0 0.0
    %165 = vmatpush1.msra.mxu0 %v142
    %166 = vmatprep.subr.mxu0 0.0
    %167 = vmatpush1.msra.mxu0 %v143
    %168 = vmatprep.subr.mxu0 0.0
    %169 = vmatpush1.msra.mxu0 %v144
    %170 = vmatprep.subr.mxu0 0.0
    %171 = vmatpush1.msra.mxu0 0.0
    %172 = vmatprep.subr.mxu0 0.0
    %173 = vmatpush1.msra.mxu0 0.0
    %174 = vmatprep.subr.mxu0 0.0
    %175 = vmatpush1.msra.mxu0 0.0
    %176 = vmatprep.subr.mxu0 0.0
    %177 = vmatpush1.msra.mxu0 0.0
    %178 = vmatprep.subr.mxu0 0.0
    %179 = vmatpush1.msra.mxu0 0.0
    %180 = vmatprep.subr.mxu0 0.0
    %181 = vmatpush1.msra.mxu0 0.0
    %182 = vmatprep.subr.mxu0 0.0
    %183 = vmatpush1.msra.mxu0 0.0
    %184 = vmatprep.subr.mxu0 0.0
    %185 = vmatpush1.msra.mxu0 0.0
    %186 = vmatprep.subr.mxu0 0.0
    %187 = vmatpush1.msra.mxu0 0.0
    %188 = vmatprep.subr.mxu0 0.0
    %189 = vmatpush1.msra.mxu0 0.0
    %190 = vmatprep.subr.mxu0 0.0
    %191 = vmatpush1.msra.mxu0 0.0
    %192 = vmatprep.subr.mxu0 0.0
    %193 = vmatpush1.msra.mxu0 0.0
    %194 = vmatprep.subr.mxu0 0.0
    %195 = vmatpush1.msra.mxu0 0.0
    %196 = vmatprep.subr.mxu0 0.0
    %197 = vmatpush1.msra.mxu0 0.0
    %198 = vmatprep.subr.mxu0 0.0
    %199 = vmatpush1.msra.mxu0 0.0
    %200 = vmatprep.subr.mxu0 0.0
    %201 = vmatpush1.msra.mxu0 0.0
    %202 = vmatprep.subr.mxu0 0.0
    %203 = vmatpush1.msra.mxu0 0.0
    %204 = vmatprep.subr.mxu0 0.0
    %205 = vmatpush1.msra.mxu0 0.0
    %206 = vmatprep.subr.mxu0 0.0
    %207 = vmatpush1.msra.mxu0 0.0
    %208 = vmatprep.subr.mxu0 0.0
    %209 = vmatpush1.msra.mxu0 0.0
    %210 = vmatprep.subr.mxu0 0.0
    %211 = vmatpush1.msra.mxu0 0.0
    %212 = vmatprep.subr.mxu0 0.0
    %213 = vmatpush1.msra.mxu0 0.0
    %214 = vmatprep.subr.mxu0 0.0
    %215 = vmatpush1.msra.mxu0 0.0
    %216 = vmatprep.subr.mxu0 0.0
    %217 = vmatpush1.msra.mxu0 0.0
    %218 = vmatprep.subr.mxu0 0.0
    %219 = vmatpush1.msra.mxu0 0.0
    %220 = vmatprep.subr.mxu0 0.0
    %221 = vmatpush1.msra.mxu0 0.0
    %222 = vmatprep.subr.mxu0 0.0
    %223 = vmatpush1.msra.mxu0 0.0
    %224 = vmatprep.subr.mxu0 0.0
    %225 = vmatpush1.msra.mxu0 0.0
    %226 = vmatprep.mubr.f32.mxu0 0.0
    %227 = vmatmul.mubr.f32.gmra.mrb[0].mxu0 %v156
    %v228 = vpop.f32.mrb[0].mxu0
    %v229 = vadd.f32 %v151, %v228
    %v230 = vpop.f32.mrb[0].mxu0
    %231 = vmatprep.mubr.f32.mxu0 0.0
    %232 = vmatmul.mubr.f32.gmra.mrb[0].mxu0 %v158
    %v233 = vpop.f32.mrb[0].mxu0
    %v234 = vadd.f32 %v151, %v233
    %v235 = vpop.f32.mrb[0].mxu0
    %236 = vmatprep.mubr.f32.mxu0 0.0
    %237 = vmatmul.mubr.f32.gmra.mrb[0].mxu0 %v160
    %v238 = vpop.f32.mrb[0].mxu0
    %v239 = vadd.f32 %v151, %v238
    %v240 = vpop.f32.mrb[0].mxu0
    %241 = vdwg.mxu0
    %v242 = vld [vmem:[%s2] sm:$0xff]
    %v243 = vld [vmem:[%s2 + $0x8] sm:$0xf]
    %v244 = vld [vmem:[%s2 + $0x10] sm:$0xff]
    %v245 = vld [vmem:[%s2 + $0x18] sm:$0xf]
    %v250 = vcombine.high %v242, %v242
    %v251 = vcombine.high %v244, %v244
    %s252 = scalar_lea.vmem [#allocation2], 64
    %v253 = vld [vmem:[%s252] sm:$0xff]
    %v254 = vld [vmem:[%s252 + $0x8] sm:$0xff]
    %v255 = vld [vmem:[%s252 + $0x10] sm:$0xff]
    %v256 = vld [vmem:[%s252 + $0x18] sm:$0xff]
    %s257 = scalar_lea.vmem %s4, 2
    %v258 = vld [vmem:[%s257] sm:$0x1]
    %v260 = vlaneseq
    %v261 = vshrl.u32 %v260, 7
    %v262 = vsub.s32 0, %v261
    %v263 = vrot.slane %v258, %v262
    %v265 = vcombine.low %v242, %v250
    %v266 = vcombine.low %v243, %v244
    %v267 = vcombine.low %v251, %v245
    %v268 = vsel %vm48, %v265, 0
    %v270 = vsel %vm48, %v266, 0
    %v272 = vsel %vm48, %v267, 0
    %274 = vmatprep.subr.mxu0 0.0
    %275 = vmatpush1.msra.mxu0 %v253
    %276 = vmatprep.subr.mxu0 0.0
    %277 = vmatpush1.msra.mxu0 %v254
    %278 = vmatprep.subr.mxu0 0.0
    %279 = vmatpush1.msra.mxu0 %v255
    %280 = vmatprep.subr.mxu0 0.0
    %281 = vmatpush1.msra.mxu0 %v256
    %282 = vmatprep.subr.mxu0 0.0
    %283 = vmatpush1.msra.mxu0 0.0
    %284 = vmatprep.subr.mxu0 0.0
    %285 = vmatpush1.msra.mxu0 0.0
    %286 = vmatprep.subr.mxu0 0.0
    %287 = vmatpush1.msra.mxu0 0.0
    %288 = vmatprep.subr.mxu0 0.0
    %289 = vmatpush1.msra.mxu0 0.0
    %290 = vmatprep.subr.mxu0 0.0
    %291 = vmatpush1.msra.mxu0 0.0
    %292 = vmatprep.subr.mxu0 0.0
    %293 = vmatpush1.msra.mxu0 0.0
    %294 = vmatprep.subr.mxu0 0.0
    %295 = vmatpush1.msra.mxu0 0.0
    %296 = vmatprep.subr.mxu0 0.0
    %297 = vmatpush1.msra.mxu0 0.0
    %298 = vmatprep.subr.mxu0 0.0
    %299 = vmatpush1.msra.mxu0 0.0
    %300 = vmatprep.subr.mxu0 0.0
    %301 = vmatpush1.msra.mxu0 0.0
    %302 = vmatprep.subr.mxu0 0.0
    %303 = vmatpush1.msra.mxu0 0.0
    %304 = vmatprep.subr.mxu0 0.0
    %305 = vmatpush1.msra.mxu0 0.0
    %306 = vmatprep.subr.mxu0 0.0
    %307 = vmatpush1.msra.mxu0 0.0
    %308 = vmatprep.subr.mxu0 0.0
    %309 = vmatpush1.msra.mxu0 0.0
    %310 = vmatprep.subr.mxu0 0.0
    %311 = vmatpush1.msra.mxu0 0.0
    %312 = vmatprep.subr.mxu0 0.0
    %313 = vmatpush1.msra.mxu0 0.0
    %314 = vmatprep.subr.mxu0 0.0
    %315 = vmatpush1.msra.mxu0 0.0
    %316 = vmatprep.subr.mxu0 0.0
    %317 = vmatpush1.msra.mxu0 0.0
    %318 = vmatprep.subr.mxu0 0.0
    %319 = vmatpush1.msra.mxu0 0.0
    %320 = vmatprep.subr.mxu0 0.0
    %321 = vmatpush1.msra.mxu0 0.0
    %322 = vmatprep.subr.mxu0 0.0
    %323 = vmatpush1.msra.mxu0 0.0
    %324 = vmatprep.subr.mxu0 0.0
    %325 = vmatpush1.msra.mxu0 0.0
    %326 = vmatprep.subr.mxu0 0.0
    %327 = vmatpush1.msra.mxu0 0.0
    %328 = vmatprep.subr.mxu0 0.0
    %329 = vmatpush1.msra.mxu0 0.0
    %330 = vmatprep.subr.mxu0 0.0
    %331 = vmatpush1.msra.mxu0 0.0
    %332 = vmatprep.subr.mxu0 0.0
    %333 = vmatpush1.msra.mxu0 0.0
    %334 = vmatprep.subr.mxu0 0.0
    %335 = vmatpush1.msra.mxu0 0.0
    %336 = vmatprep.subr.mxu0 0.0
    %337 = vmatpush1.msra.mxu0 0.0
    %338 = vmatprep.mubr.f32.mxu0 0.0
    %339 = vmatmul.mubr.f32.gmra.mrb[0].mxu0 %v268
    %v340 = vpop.f32.mrb[0].mxu0
    %v341 = vadd.f32 %v263, %v340
    %v342 = vpop.f32.mrb[0].mxu0
    %343 = vmatprep.mubr.f32.mxu0 0.0
    %344 = vmatmul.mubr.f32.gmra.mrb[0].mxu0 %v270
    %v345 = vpop.f32.mrb[0].mxu0
    %v346 = vadd.f32 %v263, %v345
    %v347 = vpop.f32.mrb[0].mxu0
    %348 = vmatprep.mubr.f32.mxu0 0.0
    %349 = vmatmul.mubr.f32.gmra.mrb[0].mxu0 %v272
    %v350 = vpop.f32.mrb[0].mxu0
    %v351 = vadd.f32 %v263, %v350
    %v352 = vpop.f32.mrb[0].mxu0
    %353 = vdwg.mxu0
    %v357 = vcombine.high %v229, %v229
    %v358 = vcombine.high %v234, %v234
    %v359 = vcombine.high %v239, %v239
    %v363 = vcombine.high %v341, %v341
    %v364 = vcombine.high %v346, %v346
    %v365 = vcombine.high %v351, %v351
    %368 = vrot.lane.b32.xlu0 %v122, 120
    %v369 = vpop.permute.xlu0 %368
    %370 = vrot.lane.b32.xlu0 %v127, 120
    %v371 = vpop.permute.xlu0 %370
    %372 = vrot.lane.b32.xlu0 %v122, 112
    %v373 = vpop.permute.xlu0 %372
    %374 = vrot.lane.b32.xlu0 %v127, 112
    %v375 = vpop.permute.xlu0 %374
    %376 = vrot.lane.b32.xlu0 %v122, 104
    %v377 = vpop.permute.xlu0 %376
    %378 = vrot.lane.b32.xlu0 %v127, 104
    %v379 = vpop.permute.xlu0 %378
    %380 = vrot.lane.b32.xlu0 %v229, 120
    %v381 = vpop.permute.xlu0 %380
    %382 = vrot.lane.b32.xlu0 %v357, 120
    %v383 = vpop.permute.xlu0 %382
    %384 = vrot.lane.b32.xlu0 %v234, 120
    %v385 = vpop.permute.xlu0 %384
    %386 = vrot.lane.b32.xlu0 %v358, 120
    %v387 = vpop.permute.xlu0 %386
    %388 = vrot.lane.b32.xlu0 %v239, 120
    %v389 = vpop.permute.xlu0 %388
    %390 = vrot.lane.b32.xlu0 %v359, 120
    %v391 = vpop.permute.xlu0 %390
    %392 = vrot.lane.b32.xlu0 %v229, 112
    %v393 = vpop.permute.xlu0 %392
    %394 = vrot.lane.b32.xlu0 %v357, 112
    %v395 = vpop.permute.xlu0 %394
    %396 = vrot.lane.b32.xlu0 %v234, 112
    %v397 = vpop.permute.xlu0 %396
    %398 = vrot.lane.b32.xlu0 %v358, 112
    %v399 = vpop.permute.xlu0 %398
    %400 = vrot.lane.b32.xlu0 %v239, 112
    %v401 = vpop.permute.xlu0 %400
    %402 = vrot.lane.b32.xlu0 %v359, 112
    %v403 = vpop.permute.xlu0 %402
    %404 = vrot.lane.b32.xlu0 %v229, 104
    %v405 = vpop.permute.xlu0 %404
    %406 = vrot.lane.b32.xlu0 %v357, 104
    %v407 = vpop.permute.xlu0 %406
    %408 = vrot.lane.b32.xlu0 %v234, 104
    %v409 = vpop.permute.xlu0 %408
    %410 = vrot.lane.b32.xlu0 %v358, 104
    %v411 = vpop.permute.xlu0 %410
    %412 = vrot.lane.b32.xlu0 %v239, 104
    %v413 = vpop.permute.xlu0 %412
    %414 = vrot.lane.b32.xlu0 %v359, 104
    %v415 = vpop.permute.xlu0 %414
    %416 = vrot.lane.b32.xlu0 %v341, 120
    %v417 = vpop.permute.xlu0 %416
    %418 = vrot.lane.b32.xlu0 %v363, 120
    %v419 = vpop.permute.xlu0 %418
    %420 = vrot.lane.b32.xlu0 %v346, 120
    %v421 = vpop.permute.xlu0 %420
    %422 = vrot.lane.b32.xlu0 %v364, 120
    %v423 = vpop.permute.xlu0 %422
    %424 = vrot.lane.b32.xlu0 %v351, 120
    %v425 = vpop.permute.xlu0 %424
    %426 = vrot.lane.b32.xlu0 %v365, 120
    %v427 = vpop.permute.xlu0 %426
    %428 = vrot.lane.b32.xlu0 %v341, 112
    %v429 = vpop.permute.xlu0 %428
    %430 = vrot.lane.b32.xlu0 %v363, 112
    %v431 = vpop.permute.xlu0 %430
    %432 = vrot.lane.b32.xlu0 %v346, 112
    %v433 = vpop.permute.xlu0 %432
    %434 = vrot.lane.b32.xlu0 %v364, 112
    %v435 = vpop.permute.xlu0 %434
    %436 = vrot.lane.b32.xlu0 %v351, 112
    %v437 = vpop.permute.xlu0 %436
    %438 = vrot.lane.b32.xlu0 %v365, 112
    %v439 = vpop.permute.xlu0 %438
    %440 = vrot.lane.b32.xlu0 %v341, 104
    %v441 = vpop.permute.xlu0 %440
    %442 = vrot.lane.b32.xlu0 %v363, 104
    %v443 = vpop.permute.xlu0 %442
    %444 = vrot.lane.b32.xlu0 %v346, 104
    %v445 = vpop.permute.xlu0 %444
    %446 = vrot.lane.b32.xlu0 %v364, 104
    %v447 = vpop.permute.xlu0 %446
    %448 = vrot.lane.b32.xlu0 %v351, 104
    %v449 = vpop.permute.xlu0 %448
    %450 = vrot.lane.b32.xlu0 %v365, 104
    %v451 = vpop.permute.xlu0 %450
    %v452 = vcombine.low %v229, %v357
    %vm453 = vcmask 64512
    %v454 = vsel %vm453, %v122, 0
    %v456 = vsel %vm453, %v452, 0
    %v458 = vsel %vm453, %v234, 0
    %460 = vmatprep.subr.mxu0 0.0
    %461 = vmatpush1.xpose.msra.mxu0 %v456
    %462 = vmatprep.subr.mxu0 0.0
    %463 = vmatpush1.xpose.msra.mxu0 %v458
    %464 = vmatprep.subr.mxu0 0.0
    %465 = vmatpush1.xpose.msra.mxu0 0.0
    %466 = vmatprep.subr.mxu0 0.0
    %467 = vmatpush1.xpose.msra.mxu0 0.0
    %468 = vmatprep.subr.mxu0 0.0
    %469 = vmatpush1.xpose.msra.mxu0 0.0
    %470 = vmatprep.subr.mxu0 0.0
    %471 = vmatpush1.xpose.msra.mxu0 0.0
    %472 = vmatprep.subr.mxu0 0.0
    %473 = vmatpush1.xpose.msra.mxu0 0.0
    %474 = vmatprep.subr.mxu0 0.0
    %475 = vmatpush1.xpose.msra.mxu0 0.0
    %476 = vmatprep.subr.mxu0 0.0
    %477 = vmatpush1.xpose.msra.mxu0 0.0
    %478 = vmatprep.subr.mxu0 0.0
    %479 = vmatpush1.xpose.msra.mxu0 0.0
    %480 = vmatprep.subr.mxu0 0.0
    %481 = vmatpush1.xpose.msra.mxu0 0.0
    %482 = vmatprep.subr.mxu0 0.0
    %483 = vmatpush1.xpose.msra.mxu0 0.0
    %484 = vmatprep.subr.mxu0 0.0
    %485 = vmatpush1.xpose.msra.mxu0 0.0
    %486 = vmatprep.subr.mxu0 0.0
    %487 = vmatpush1.xpose.msra.mxu0 0.0
    %488 = vmatprep.subr.mxu0 0.0
    %489 = vmatpush1.xpose.msra.mxu0 0.0
    %490 = vmatprep.subr.mxu0 0.0
    %491 = vmatpush1.xpose.msra.mxu0 0.0
    %492 = vmatprep.subr.mxu0 0.0
    %493 = vmatpush1.xpose.msra.mxu0 0.0
    %494 = vmatprep.subr.mxu0 0.0
    %495 = vmatpush1.xpose.msra.mxu0 0.0
    %496 = vmatprep.subr.mxu0 0.0
    %497 = vmatpush1.xpose.msra.mxu0 0.0
    %498 = vmatprep.subr.mxu0 0.0
    %499 = vmatpush1.xpose.msra.mxu0 0.0
    %500 = vmatprep.subr.mxu0 0.0
    %501 = vmatpush1.xpose.msra.mxu0 0.0
    %502 = vmatprep.subr.mxu0 0.0
    %503 = vmatpush1.xpose.msra.mxu0 0.0
    %504 = vmatprep.subr.mxu0 0.0
    %505 = vmatpush1.xpose.msra.mxu0 0.0
    %506 = vmatprep.subr.mxu0 0.0
    %507 = vmatpush1.xpose.msra.mxu0 0.0
    %508 = vmatprep.subr.mxu0 0.0
    %509 = vmatpush1.xpose.msra.mxu0 0.0
    %510 = vmatprep.subr.mxu0 0.0
    %511 = vmatpush1.xpose.msra.mxu0 0.0
    %512 = vmatprep.subr.mxu0 0.0
    %513 = vmatpush1.xpose.msra.mxu0 0.0
    %514 = vmatprep.subr.mxu0 0.0
    %515 = vmatpush1.xpose.msra.mxu0 0.0
    %516 = vmatprep.subr.mxu0 0.0
    %517 = vmatpush1.xpose.msra.mxu0 0.0
    %518 = vmatprep.subr.mxu0 0.0
    %519 = vmatpush1.xpose.msra.mxu0 0.0
    %520 = vmatprep.subr.mxu0 0.0
    %521 = vmatpush1.xpose.msra.mxu0 0.0
    %522 = vmatprep.subr.mxu0 0.0
    %523 = vmatpush1.xpose.msra.mxu0 0.0
    %524 = vmatprep.mubr.f32.mxu0 0.0
    %525 = vmatmul.mubr.f32.gmra.mrb[0].mxu0 %v454
    %v526 = vpop.f32.mrb[0].mxu0
    %v527 = vadd.f32 0.0, %v526
    %v528 = vpop.f32.mrb[0].mxu0
    %529 = vdwg.mxu0
    %v530 = vcombine.low %v358, %v239
    %v531 = vsel %vm453, %v127, 0
    %v533 = vsel %vm453, %v530, 0
    %v535 = vsel %vm453, %v359, 0
    %537 = vmatprep.subr.mxu0 0.0
    %538 = vmatpush1.xpose.msra.mxu0 %v533
    %539 = vmatprep.subr.mxu0 0.0
    %540 = vmatpush1.xpose.msra.mxu0 %v535
    %541 = vmatprep.subr.mxu0 0.0
    %542 = vmatpush1.xpose.msra.mxu0 0.0
    %543 = vmatprep.subr.mxu0 0.0
    %544 = vmatpush1.xpose.msra.mxu0 0.0
    %545 = vmatprep.subr.mxu0 0.0
    %546 = vmatpush1.xpose.msra.mxu0 0.0
    %547 = vmatprep.subr.mxu0 0.0
    %548 = vmatpush1.xpose.msra.mxu0 0.0
    %549 = vmatprep.subr.mxu0 0.0
    %550 = vmatpush1.xpose.msra.mxu0 0.0
    %551 = vmatprep.subr.mxu0 0.0
    %552 = vmatpush1.xpose.msra.mxu0 0.0
    %553 = vmatprep.subr.mxu0 0.0
    %554 = vmatpush1.xpose.msra.mxu0 0.0
    %555 = vmatprep.subr.mxu0 0.0
    %556 = vmatpush1.xpose.msra.mxu0 0.0
    %557 = vmatprep.subr.mxu0 0.0
    %558 = vmatpush1.xpose.msra.mxu0 0.0
    %559 = vmatprep.subr.mxu0 0.0
    %560 = vmatpush1.xpose.msra.mxu0 0.0
    %561 = vmatprep.subr.mxu0 0.0
    %562 = vmatpush1.xpose.msra.mxu0 0.0
    %563 = vmatprep.subr.mxu0 0.0
    %564 = vmatpush1.xpose.msra.mxu0 0.0
    %565 = vmatprep.subr.mxu0 0.0
    %566 = vmatpush1.xpose.msra.mxu0 0.0
    %567 = vmatprep.subr.mxu0 0.0
    %568 = vmatpush1.xpose.msra.mxu0 0.0
    %569 = vmatprep.subr.mxu0 0.0
    %570 = vmatpush1.xpose.msra.mxu0 0.0
    %571 = vmatprep.subr.mxu0 0.0
    %572 = vmatpush1.xpose.msra.mxu0 0.0
    %573 = vmatprep.subr.mxu0 0.0
    %574 = vmatpush1.xpose.msra.mxu0 0.0
    %575 = vmatprep.subr.mxu0 0.0
    %576 = vmatpush1.xpose.msra.mxu0 0.0
    %577 = vmatprep.subr.mxu0 0.0
    %578 = vmatpush1.xpose.msra.mxu0 0.0
    %579 = vmatprep.subr.mxu0 0.0
    %580 = vmatpush1.xpose.msra.mxu0 0.0
    %581 = vmatprep.subr.mxu0 0.0
    %582 = vmatpush1.xpose.msra.mxu0 0.0
    %583 = vmatprep.subr.mxu0 0.0
    %584 = vmatpush1.xpose.msra.mxu0 0.0
    %585 = vmatprep.subr.mxu0 0.0
    %586 = vmatpush1.xpose.msra.mxu0 0.0
    %587 = vmatprep.subr.mxu0 0.0
    %588 = vmatpush1.xpose.msra.mxu0 0.0
    %589 = vmatprep.subr.mxu0 0.0
    %590 = vmatpush1.xpose.msra.mxu0 0.0
    %591 = vmatprep.subr.mxu0 0.0
    %592 = vmatpush1.xpose.msra.mxu0 0.0
    %593 = vmatprep.subr.mxu0 0.0
    %594 = vmatpush1.xpose.msra.mxu0 0.0
    %595 = vmatprep.subr.mxu0 0.0
    %596 = vmatpush1.xpose.msra.mxu0 0.0
    %597 = vmatprep.subr.mxu0 0.0
    %598 = vmatpush1.xpose.msra.mxu0 0.0
    %599 = vmatprep.subr.mxu0 0.0
    %600 = vmatpush1.xpose.msra.mxu0 0.0
    %601 = vmatprep.mubr.f32.mxu0 0.0
    %602 = vmatmul.mubr.f32.gmra.mrb[0].mxu0 %v531
    %v603 = vpop.f32.mrb[0].mxu0
    %v604 = vadd.f32 0.0, %v603
    %v605 = vpop.f32.mrb[0].mxu0
    %606 = vdwg.mxu0
    %v607 = vcombine.low %v381, %v383
    %v608 = vsel %vm453, %v369, 0
    %v610 = vsel %vm453, %v607, 0
    %v612 = vsel %vm453, %v385, 0
    %614 = vmatprep.subr.mxu0 0.0
    %615 = vmatpush1.xpose.msra.mxu0 %v610
    %616 = vmatprep.subr.mxu0 0.0
    %617 = vmatpush1.xpose.msra.mxu0 %v612
    %618 = vmatprep.subr.mxu0 0.0
    %619 = vmatpush1.xpose.msra.mxu0 0.0
    %620 = vmatprep.subr.mxu0 0.0
    %621 = vmatpush1.xpose.msra.mxu0 0.0
    %622 = vmatprep.subr.mxu0 0.0
    %623 = vmatpush1.xpose.msra.mxu0 0.0
    %624 = vmatprep.subr.mxu0 0.0
    %625 = vmatpush1.xpose.msra.mxu0 0.0
    %626 = vmatprep.subr.mxu0 0.0
    %627 = vmatpush1.xpose.msra.mxu0 0.0
    %628 = vmatprep.subr.mxu0 0.0
    %629 = vmatpush1.xpose.msra.mxu0 0.0
    %630 = vmatprep.subr.mxu0 0.0
    %631 = vmatpush1.xpose.msra.mxu0 0.0
    %632 = vmatprep.subr.mxu0 0.0
    %633 = vmatpush1.xpose.msra.mxu0 0.0
    %634 = vmatprep.subr.mxu0 0.0
    %635 = vmatpush1.xpose.msra.mxu0 0.0
    %636 = vmatprep.subr.mxu0 0.0
    %637 = vmatpush1.xpose.msra.mxu0 0.0
    %638 = vmatprep.subr.mxu0 0.0
    %639 = vmatpush1.xpose.msra.mxu0 0.0
    %640 = vmatprep.subr.mxu0 0.0
    %641 = vmatpush1.xpose.msra.mxu0 0.0
    %642 = vmatprep.subr.mxu0 0.0
    %643 = vmatpush1.xpose.msra.mxu0 0.0
    %644 = vmatprep.subr.mxu0 0.0
    %645 = vmatpush1.xpose.msra.mxu0 0.0
    %646 = vmatprep.subr.mxu0 0.0
    %647 = vmatpush1.xpose.msra.mxu0 0.0
    %648 = vmatprep.subr.mxu0 0.0
    %649 = vmatpush1.xpose.msra.mxu0 0.0
    %650 = vmatprep.subr.mxu0 0.0
    %651 = vmatpush1.xpose.msra.mxu0 0.0
    %652 = vmatprep.subr.mxu0 0.0
    %653 = vmatpush1.xpose.msra.mxu0 0.0
    %654 = vmatprep.subr.mxu0 0.0
    %655 = vmatpush1.xpose.msra.mxu0 0.0
    %656 = vmatprep.subr.mxu0 0.0
    %657 = vmatpush1.xpose.msra.mxu0 0.0
    %658 = vmatprep.subr.mxu0 0.0
    %659 = vmatpush1.xpose.msra.mxu0 0.0
    %660 = vmatprep.subr.mxu0 0.0
    %661 = vmatpush1.xpose.msra.mxu0 0.0
    %662 = vmatprep.subr.mxu0 0.0
    %663 = vmatpush1.xpose.msra.mxu0 0.0
    %664 = vmatprep.subr.mxu0 0.0
    %665 = vmatpush1.xpose.msra.mxu0 0.0
    %666 = vmatprep.subr.mxu0 0.0
    %667 = vmatpush1.xpose.msra.mxu0 0.0
    %668 = vmatprep.subr.mxu0 0.0
    %669 = vmatpush1.xpose.msra.mxu0 0.0
    %670 = vmatprep.subr.mxu0 0.0
    %671 = vmatpush1.xpose.msra.mxu0 0.0
    %672 = vmatprep.subr.mxu0 0.0
    %673 = vmatpush1.xpose.msra.mxu0 0.0
    %674 = vmatprep.subr.mxu0 0.0
    %675 = vmatpush1.xpose.msra.mxu0 0.0
    %676 = vmatprep.subr.mxu0 0.0
    %677 = vmatpush1.xpose.msra.mxu0 0.0
    %678 = vmatprep.mubr.f32.mxu0 0.0
    %679 = vmatmul.mubr.f32.gmra.mrb[0].mxu0 %v608
    %v680 = vpop.f32.mrb[0].mxu0
    %v681 = vadd.f32 0.0, %v680
    %v682 = vpop.f32.mrb[0].mxu0
    %683 = vdwg.mxu0
    %v684 = vcombine.low %v387, %v389
    %v685 = vsel %vm453, %v371, 0
    %v687 = vsel %vm453, %v684, 0
    %v689 = vsel %vm453, %v391, 0
    %691 = vmatprep.subr.mxu0 0.0
    %692 = vmatpush1.xpose.msra.mxu0 %v687
    %693 = vmatprep.subr.mxu0 0.0
    %694 = vmatpush1.xpose.msra.mxu0 %v689
    %695 = vmatprep.subr.mxu0 0.0
    %696 = vmatpush1.xpose.msra.mxu0 0.0
    %697 = vmatprep.subr.mxu0 0.0
    %698 = vmatpush1.xpose.msra.mxu0 0.0
    %699 = vmatprep.subr.mxu0 0.0
    %700 = vmatpush1.xpose.msra.mxu0 0.0
    %701 = vmatprep.subr.mxu0 0.0
    %702 = vmatpush1.xpose.msra.mxu0 0.0
    %703 = vmatprep.subr.mxu0 0.0
    %704 = vmatpush1.xpose.msra.mxu0 0.0
    %705 = vmatprep.subr.mxu0 0.0
    %706 = vmatpush1.xpose.msra.mxu0 0.0
    %707 = vmatprep.subr.mxu0 0.0
    %708 = vmatpush1.xpose.msra.mxu0 0.0
    %709 = vmatprep.subr.mxu0 0.0
    %710 = vmatpush1.xpose.msra.mxu0 0.0
    %711 = vmatprep.subr.mxu0 0.0
    %712 = vmatpush1.xpose.msra.mxu0 0.0
    %713 = vmatprep.subr.mxu0 0.0
    %714 = vmatpush1.xpose.msra.mxu0 0.0
    %715 = vmatprep.subr.mxu0 0.0
    %716 = vmatpush1.xpose.msra.mxu0 0.0
    %717 = vmatprep.subr.mxu0 0.0
    %718 = vmatpush1.xpose.msra.mxu0 0.0
    %719 = vmatprep.subr.mxu0 0.0
    %720 = vmatpush1.xpose.msra.mxu0 0.0
    %721 = vmatprep.subr.mxu0 0.0
    %722 = vmatpush1.xpose.msra.mxu0 0.0
    %723 = vmatprep.subr.mxu0 0.0
    %724 = vmatpush1.xpose.msra.mxu0 0.0
    %725 = vmatprep.subr.mxu0 0.0
    %726 = vmatpush1.xpose.msra.mxu0 0.0
    %727 = vmatprep.subr.mxu0 0.0
    %728 = vmatpush1.xpose.msra.mxu0 0.0
    %729 = vmatprep.subr.mxu0 0.0
    %730 = vmatpush1.xpose.msra.mxu0 0.0
    %731 = vmatprep.subr.mxu0 0.0
    %732 = vmatpush1.xpose.msra.mxu0 0.0
    %733 = vmatprep.subr.mxu0 0.0
    %734 = vmatpush1.xpose.msra.mxu0 0.0
    %735 = vmatprep.subr.mxu0 0.0
    %736 = vmatpush1.xpose.msra.mxu0 0.0
    %737 = vmatprep.subr.mxu0 0.0
    %738 = vmatpush1.xpose.msra.mxu0 0.0
    %739 = vmatprep.subr.mxu0 0.0
    %740 = vmatpush1.xpose.msra.mxu0 0.0
    %741 = vmatprep.subr.mxu0 0.0
    %742 = vmatpush1.xpose.msra.mxu0 0.0
    %743 = vmatprep.subr.mxu0 0.0
    %744 = vmatpush1.xpose.msra.mxu0 0.0
    %745 = vmatprep.subr.mxu0 0.0
    %746 = vmatpush1.xpose.msra.mxu0 0.0
    %747 = vmatprep.subr.mxu0 0.0
    %748 = vmatpush1.xpose.msra.mxu0 0.0
    %749 = vmatprep.subr.mxu0 0.0
    %750 = vmatpush1.xpose.msra.mxu0 0.0
    %751 = vmatprep.subr.mxu0 0.0
    %752 = vmatpush1.xpose.msra.mxu0 0.0
    %753 = vmatprep.subr.mxu0 0.0
    %754 = vmatpush1.xpose.msra.mxu0 0.0
    %755 = vmatprep.mubr.f32.mxu0 0.0
    %756 = vmatmul.mubr.f32.gmra.mrb[0].mxu0 %v685
    %v757 = vpop.f32.mrb[0].mxu0
    %v758 = vadd.f32 0.0, %v757
    %v759 = vpop.f32.mrb[0].mxu0
    %760 = vdwg.mxu0
    %v761 = vcombine.low %v393, %v395
    %v762 = vsel %vm453, %v373, 0
    %v764 = vsel %vm453, %v761, 0
    %v766 = vsel %vm453, %v397, 0
    %768 = vmatprep.subr.mxu0 0.0
    %769 = vmatpush1.xpose.msra.mxu0 %v764
    %770 = vmatprep.subr.mxu0 0.0
    %771 = vmatpush1.xpose.msra.mxu0 %v766
    %772 = vmatprep.subr.mxu0 0.0
    %773 = vmatpush1.xpose.msra.mxu0 0.0
    %774 = vmatprep.subr.mxu0 0.0
    %775 = vmatpush1.xpose.msra.mxu0 0.0
    %776 = vmatprep.subr.mxu0 0.0
    %777 = vmatpush1.xpose.msra.mxu0 0.0
    %778 = vmatprep.subr.mxu0 0.0
    %779 = vmatpush1.xpose.msra.mxu0 0.0
    %780 = vmatprep.subr.mxu0 0.0
    %781 = vmatpush1.xpose.msra.mxu0 0.0
    %782 = vmatprep.subr.mxu0 0.0
    %783 = vmatpush1.xpose.msra.mxu0 0.0
    %784 = vmatprep.subr.mxu0 0.0
    %785 = vmatpush1.xpose.msra.mxu0 0.0
    %786 = vmatprep.subr.mxu0 0.0
    %787 = vmatpush1.xpose.msra.mxu0 0.0
    %788 = vmatprep.subr.mxu0 0.0
    %789 = vmatpush1.xpose.msra.mxu0 0.0
    %790 = vmatprep.subr.mxu0 0.0
    %791 = vmatpush1.xpose.msra.mxu0 0.0
    %792 = vmatprep.subr.mxu0 0.0
    %793 = vmatpush1.xpose.msra.mxu0 0.0
    %794 = vmatprep.subr.mxu0 0.0
    %795 = vmatpush1.xpose.msra.mxu0 0.0
    %796 = vmatprep.subr.mxu0 0.0
    %797 = vmatpush1.xpose.msra.mxu0 0.0
    %798 = vmatprep.subr.mxu0 0.0
    %799 = vmatpush1.xpose.msra.mxu0 0.0
    %800 = vmatprep.subr.mxu0 0.0
    %801 = vmatpush1.xpose.msra.mxu0 0.0
    %802 = vmatprep.subr.mxu0 0.0
    %803 = vmatpush1.xpose.msra.mxu0 0.0
    %804 = vmatprep.subr.mxu0 0.0
    %805 = vmatpush1.xpose.msra.mxu0 0.0
    %806 = vmatprep.subr.mxu0 0.0
    %807 = vmatpush1.xpose.msra.mxu0 0.0
    %808 = vmatprep.subr.mxu0 0.0
    %809 = vmatpush1.xpose.msra.mxu0 0.0
    %810 = vmatprep.subr.mxu0 0.0
    %811 = vmatpush1.xpose.msra.mxu0 0.0
    %812 = vmatprep.subr.mxu0 0.0
    %813 = vmatpush1.xpose.msra.mxu0 0.0
    %814 = vmatprep.subr.mxu0 0.0
    %815 = vmatpush1.xpose.msra.mxu0 0.0
    %816 = vmatprep.subr.mxu0 0.0
    %817 = vmatpush1.xpose.msra.mxu0 0.0
    %818 = vmatprep.subr.mxu0 0.0
    %819 = vmatpush1.xpose.msra.mxu0 0.0
    %820 = vmatprep.subr.mxu0 0.0
    %821 = vmatpush1.xpose.msra.mxu0 0.0
    %822 = vmatprep.subr.mxu0 0.0
    %823 = vmatpush1.xpose.msra.mxu0 0.0
    %824 = vmatprep.subr.mxu0 0.0
    %825 = vmatpush1.xpose.msra.mxu0 0.0
    %826 = vmatprep.subr.mxu0 0.0
    %827 = vmatpush1.xpose.msra.mxu0 0.0
    %828 = vmatprep.subr.mxu0 0.0
    %829 = vmatpush1.xpose.msra.mxu0 0.0
    %830 = vmatprep.subr.mxu0 0.0
    %831 = vmatpush1.xpose.msra.mxu0 0.0
    %832 = vmatprep.mubr.f32.mxu0 0.0
    %833 = vmatmul.mubr.f32.gmra.mrb[0].mxu0 %v762
    %v834 = vpop.f32.mrb[0].mxu0
    %v835 = vadd.f32 0.0, %v834
    %v836 = vpop.f32.mrb[0].mxu0
    %837 = vdwg.mxu0
    %v838 = vcombine.low %v399, %v401
    %v839 = vsel %vm453, %v375, 0
    %v841 = vsel %vm453, %v838, 0
    %v843 = vsel %vm453, %v403, 0
    %845 = vmatprep.subr.mxu0 0.0
    %846 = vmatpush1.xpose.msra.mxu0 %v841
    %847 = vmatprep.subr.mxu0 0.0
    %848 = vmatpush1.xpose.msra.mxu0 %v843
    %849 = vmatprep.subr.mxu0 0.0
    %850 = vmatpush1.xpose.msra.mxu0 0.0
    %851 = vmatprep.subr.mxu0 0.0
    %852 = vmatpush1.xpose.msra.mxu0 0.0
    %853 = vmatprep.subr.mxu0 0.0
    %854 = vmatpush1.xpose.msra.mxu0 0.0
    %855 = vmatprep.subr.mxu0 0.0
    %856 = vmatpush1.xpose.msra.mxu0 0.0
    %857 = vmatprep.subr.mxu0 0.0
    %858 = vmatpush1.xpose.msra.mxu0 0.0
    %859 = vmatprep.subr.mxu0 0.0
    %860 = vmatpush1.xpose.msra.mxu0 0.0
    %861 = vmatprep.subr.mxu0 0.0
    %862 = vmatpush1.xpose.msra.mxu0 0.0
    %863 = vmatprep.subr.mxu0 0.0
    %864 = vmatpush1.xpose.msra.mxu0 0.0
    %865 = vmatprep.subr.mxu0 0.0
    %866 = vmatpush1.xpose.msra.mxu0 0.0
    %867 = vmatprep.subr.mxu0 0.0
    %868 = vmatpush1.xpose.msra.mxu0 0.0
    %869 = vmatprep.subr.mxu0 0.0
    %870 = vmatpush1.xpose.msra.mxu0 0.0
    %871 = vmatprep.subr.mxu0 0.0
    %872 = vmatpush1.xpose.msra.mxu0 0.0
    %873 = vmatprep.subr.mxu0 0.0
    %874 = vmatpush1.xpose.msra.mxu0 0.0
    %875 = vmatprep.subr.mxu0 0.0
    %876 = vmatpush1.xpose.msra.mxu0 0.0
    %877 = vmatprep.subr.mxu0 0.0
    %878 = vmatpush1.xpose.msra.mxu0 0.0
    %879 = vmatprep.subr.mxu0 0.0
    %880 = vmatpush1.xpose.msra.mxu0 0.0
    %881 = vmatprep.subr.mxu0 0.0
    %882 = vmatpush1.xpose.msra.mxu0 0.0
    %883 = vmatprep.subr.mxu0 0.0
    %884 = vmatpush1.xpose.msra.mxu0 0.0
    %885 = vmatprep.subr.mxu0 0.0
    %886 = vmatpush1.xpose.msra.mxu0 0.0
    %887 = vmatprep.subr.mxu0 0.0
    %888 = vmatpush1.xpose.msra.mxu0 0.0
    %889 = vmatprep.subr.mxu0 0.0
    %890 = vmatpush1.xpose.msra.mxu0 0.0
    %891 = vmatprep.subr.mxu0 0.0
    %892 = vmatpush1.xpose.msra.mxu0 0.0
    %893 = vmatprep.subr.mxu0 0.0
    %894 = vmatpush1.xpose.msra.mxu0 0.0
    %895 = vmatprep.subr.mxu0 0.0
    %896 = vmatpush1.xpose.msra.mxu0 0.0
    %897 = vmatprep.subr.mxu0 0.0
    %898 = vmatpush1.xpose.msra.mxu0 0.0
    %899 = vmatprep.subr.mxu0 0.0
    %900 = vmatpush1.xpose.msra.mxu0 0.0
    %901 = vmatprep.subr.mxu0 0.0
    %902 = vmatpush1.xpose.msra.mxu0 0.0
    %903 = vmatprep.subr.mxu0 0.0
    %904 = vmatpush1.xpose.msra.mxu0 0.0
    %905 = vmatprep.subr.mxu0 0.0
    %906 = vmatpush1.xpose.msra.mxu0 0.0
    %907 = vmatprep.subr.mxu0 0.0
    %908 = vmatpush1.xpose.msra.mxu0 0.0
    %909 = vmatprep.mubr.f32.mxu0 0.0
    %910 = vmatmul.mubr.f32.gmra.mrb[0].mxu0 %v839
    %v911 = vpop.f32.mrb[0].mxu0
    %v912 = vadd.f32 0.0, %v911
    %v913 = vpop.f32.mrb[0].mxu0
    %914 = vdwg.mxu0
    %v915 = vcombine.low %v405, %v407
    %v916 = vsel %vm453, %v377, 0
    %v918 = vsel %vm453, %v915, 0
    %v920 = vsel %vm453, %v409, 0
    %922 = vmatprep.subr.mxu0 0.0
    %923 = vmatpush1.xpose.msra.mxu0 %v918
    %924 = vmatprep.subr.mxu0 0.0
    %925 = vmatpush1.xpose.msra.mxu0 %v920
    %926 = vmatprep.subr.mxu0 0.0
    %927 = vmatpush1.xpose.msra.mxu0 0.0
    %928 = vmatprep.subr.mxu0 0.0
    %929 = vmatpush1.xpose.msra.mxu0 0.0
    %930 = vmatprep.subr.mxu0 0.0
    %931 = vmatpush1.xpose.msra.mxu0 0.0
    %932 = vmatprep.subr.mxu0 0.0
    %933 = vmatpush1.xpose.msra.mxu0 0.0
    %934 = vmatprep.subr.mxu0 0.0
    %935 = vmatpush1.xpose.msra.mxu0 0.0
    %936 = vmatprep.subr.mxu0 0.0
    %937 = vmatpush1.xpose.msra.mxu0 0.0
    %938 = vmatprep.subr.mxu0 0.0
    %939 = vmatpush1.xpose.msra.mxu0 0.0
    %940 = vmatprep.subr.mxu0 0.0
    %941 = vmatpush1.xpose.msra.mxu0 0.0
    %942 = vmatprep.subr.mxu0 0.0
    %943 = vmatpush1.xpose.msra.mxu0 0.0
    %944 = vmatprep.subr.mxu0 0.0
    %945 = vmatpush1.xpose.msra.mxu0 0.0
    %946 = vmatprep.subr.mxu0 0.0
    %947 = vmatpush1.xpose.msra.mxu0 0.0
    %948 = vmatprep.subr.mxu0 0.0
    %949 = vmatpush1.xpose.msra.mxu0 0.0
    %950 = vmatprep.subr.mxu0 0.0
    %951 = vmatpush1.xpose.msra.mxu0 0.0
    %952 = vmatprep.subr.mxu0 0.0
    %953 = vmatpush1.xpose.msra.mxu0 0.0
    %954 = vmatprep.subr.mxu0 0.0
    %955 = vmatpush1.xpose.msra.mxu0 0.0
    %956 = vmatprep.subr.mxu0 0.0
    %957 = vmatpush1.xpose.msra.mxu0 0.0
    %958 = vmatprep.subr.mxu0 0.0
    %959 = vmatpush1.xpose.msra.mxu0 0.0
    %960 = vmatprep.subr.mxu0 0.0
    %961 = vmatpush1.xpose.msra.mxu0 0.0
    %962 = vmatprep.subr.mxu0 0.0
    %963 = vmatpush1.xpose.msra.mxu0 0.0
    %964 = vmatprep.subr.mxu0 0.0
    %965 = vmatpush1.xpose.msra.mxu0 0.0
    %966 = vmatprep.subr.mxu0 0.0
    %967 = vmatpush1.xpose.msra.mxu0 0.0
    %968 = vmatprep.subr.mxu0 0.0
    %969 = vmatpush1.xpose.msra.mxu0 0.0
    %970 = vmatprep.subr.mxu0 0.0
    %971 = vmatpush1.xpose.msra.mxu0 0.0
    %972 = vmatprep.subr.mxu0 0.0
    %973 = vmatpush1.xpose.msra.mxu0 0.0
    %974 = vmatprep.subr.mxu0 0.0
    %975 = vmatpush1.xpose.msra.mxu0 0.0
    %976 = vmatprep.subr.mxu0 0.0
    %977 = vmatpush1.xpose.msra.mxu0 0.0
    %978 = vmatprep.subr.mxu0 0.0
    %979 = vmatpush1.xpose.msra.mxu0 0.0
    %980 = vmatprep.subr.mxu0 0.0
    %981 = vmatpush1.xpose.msra.mxu0 0.0
    %982 = vmatprep.subr.mxu0 0.0
    %983 = vmatpush1.xpose.msra.mxu0 0.0
    %984 = vmatprep.subr.mxu0 0.0
    %985 = vmatpush1.xpose.msra.mxu0 0.0
    %986 = vmatprep.mubr.f32.mxu0 0.0
    %987 = vmatmul.mubr.f32.gmra.mrb[0].mxu0 %v916
    %v988 = vpop.f32.mrb[0].mxu0
    %v989 = vadd.f32 0.0, %v988
    %v990 = vpop.f32.mrb[0].mxu0
    %991 = vdwg.mxu0
    %v992 = vcombine.low %v411, %v413
    %v993 = vsel %vm453, %v379, 0
    %v995 = vsel %vm453, %v992, 0
    %v997 = vsel %vm453, %v415, 0
    %999 = vmatprep.subr.mxu0 0.0
    %1000 = vmatpush1.xpose.msra.mxu0 %v995
    %1001 = vmatprep.subr.mxu0 0.0
    %1002 = vmatpush1.xpose.msra.mxu0 %v997
    %1003 = vmatprep.subr.mxu0 0.0
    %1004 = vmatpush1.xpose.msra.mxu0 0.0
    %1005 = vmatprep.subr.mxu0 0.0
    %1006 = vmatpush1.xpose.msra.mxu0 0.0
    %1007 = vmatprep.subr.mxu0 0.0
    %1008 = vmatpush1.xpose.msra.mxu0 0.0
    %1009 = vmatprep.subr.mxu0 0.0
    %1010 = vmatpush1.xpose.msra.mxu0 0.0
    %1011 = vmatprep.subr.mxu0 0.0
    %1012 = vmatpush1.xpose.msra.mxu0 0.0
    %1013 = vmatprep.subr.mxu0 0.0
    %1014 = vmatpush1.xpose.msra.mxu0 0.0
    %1015 = vmatprep.subr.mxu0 0.0
    %1016 = vmatpush1.xpose.msra.mxu0 0.0
    %1017 = vmatprep.subr.mxu0 0.0
    %1018 = vmatpush1.xpose.msra.mxu0 0.0
    %1019 = vmatprep.subr.mxu0 0.0
    %1020 = vmatpush1.xpose.msra.mxu0 0.0
    %1021 = vmatprep.subr.mxu0 0.0
    %1022 = vmatpush1.xpose.msra.mxu0 0.0
    %1023 = vmatprep.subr.mxu0 0.0
    %1024 = vmatpush1.xpose.msra.mxu0 0.0
    %1025 = vmatprep.subr.mxu0 0.0
    %1026 = vmatpush1.xpose.msra.mxu0 0.0
    %1027 = vmatprep.subr.mxu0 0.0
    %1028 = vmatpush1.xpose.msra.mxu0 0.0
    %1029 = vmatprep.subr.mxu0 0.0
    %1030 = vmatpush1.xpose.msra.mxu0 0.0
    %1031 = vmatprep.subr.mxu0 0.0
    %1032 = vmatpush1.xpose.msra.mxu0 0.0
    %1033 = vmatprep.subr.mxu0 0.0
    %1034 = vmatpush1.xpose.msra.mxu0 0.0
    %1035 = vmatprep.subr.mxu0 0.0
    %1036 = vmatpush1.xpose.msra.mxu0 0.0
    %1037 = vmatprep.subr.mxu0 0.0
    %1038 = vmatpush1.xpose.msra.mxu0 0.0
    %1039 = vmatprep.subr.mxu0 0.0
    %1040 = vmatpush1.xpose.msra.mxu0 0.0
    %1041 = vmatprep.subr.mxu0 0.0
    %1042 = vmatpush1.xpose.msra.mxu0 0.0
    %1043 = vmatprep.subr.mxu0 0.0
    %1044 = vmatpush1.xpose.msra.mxu0 0.0
    %1045 = vmatprep.subr.mxu0 0.0
    %1046 = vmatpush1.xpose.msra.mxu0 0.0
    %1047 = vmatprep.subr.mxu0 0.0
    %1048 = vmatpush1.xpose.msra.mxu0 0.0
    %1049 = vmatprep.subr.mxu0 0.0
    %1050 = vmatpush1.xpose.msra.mxu0 0.0
    %1051 = vmatprep.subr.mxu0 0.0
    %1052 = vmatpush1.xpose.msra.mxu0 0.0
    %1053 = vmatprep.subr.mxu0 0.0
    %1054 = vmatpush1.xpose.msra.mxu0 0.0
    %1055 = vmatprep.subr.mxu0 0.0
    %1056 = vmatpush1.xpose.msra.mxu0 0.0
    %1057 = vmatprep.subr.mxu0 0.0
    %1058 = vmatpush1.xpose.msra.mxu0 0.0
    %1059 = vmatprep.subr.mxu0 0.0
    %1060 = vmatpush1.xpose.msra.mxu0 0.0
    %1061 = vmatprep.subr.mxu0 0.0
    %1062 = vmatpush1.xpose.msra.mxu0 0.0
    %1063 = vmatprep.mubr.f32.mxu0 0.0
    %1064 = vmatmul.mubr.f32.gmra.mrb[0].mxu0 %v993
    %v1065 = vpop.f32.mrb[0].mxu0
    %v1066 = vadd.f32 0.0, %v1065
    %v1067 = vpop.f32.mrb[0].mxu0
    %1068 = vdwg.mxu0
    %v1069 = vmul.f32 %v527, 0.35355338
    %v1070 = vmul.f32 %v604, 0.35355338
    %v1071 = vmul.f32 %v681, 0.35355338
    %v1072 = vmul.f32 %v758, 0.35355338
    %v1073 = vmul.f32 %v835, 0.35355338
    %v1074 = vmul.f32 %v912, 0.35355338
    %v1075 = vmul.f32 %v989, 0.35355338
    %v1076 = vmul.f32 %v1066, 0.35355338
    %vm1077 = vcmask 97280
    %v1078 = vsel %vm1077, %v1069, -inf
    %1079 = vmax.xlane.f32.xlu0 %v1078
    %v1080 = vpop.xlane.xlu0 %1079
    %v1081 = vsel %vm1077, %v1070, -inf
    %1082 = vmax.xlane.f32.xlu0 %v1081
    %v1083 = vpop.xlane.xlu0 %1082
    %v1084 = vsel %vm1077, %v1071, -inf
    %1085 = vmax.xlane.f32.xlu0 %v1084
    %v1086 = vpop.xlane.xlu0 %1085
    %v1087 = vsel %vm1077, %v1072, -inf
    %1088 = vmax.xlane.f32.xlu0 %v1087
    %v1089 = vpop.xlane.xlu0 %1088
    %v1090 = vsel %vm1077, %v1073, -inf
    %1091 = vmax.xlane.f32.xlu0 %v1090
    %v1092 = vpop.xlane.xlu0 %1091
    %v1093 = vsel %vm1077, %v1074, -inf
    %1094 = vmax.xlane.f32.xlu0 %v1093
    %v1095 = vpop.xlane.xlu0 %1094
    %v1096 = vsel %vm1077, %v1075, -inf
    %1097 = vmax.xlane.f32.xlu0 %v1096
    %v1098 = vpop.xlane.xlu0 %1097
    %v1099 = vsel %vm1077, %v1076, -inf
    %1100 = vmax.xlane.f32.xlu0 %v1099
    %v1101 = vpop.xlane.xlu0 %1100
    %v1102 = vsub.f32 %v1069, %v1080
    %v1103 = vsub.f32 %v1070, %v1083
    %v1104 = vsub.f32 %v1071, %v1086
    %v1105 = vsub.f32 %v1072, %v1089
    %v1106 = vsub.f32 %v1073, %v1092
    %v1107 = vsub.f32 %v1074, %v1095
    %v1108 = vsub.f32 %v1075, %v1098
    %v1109 = vsub.f32 %v1076, %v1101
    %v1110 = vmul.f32 %v1102, 1.442695
    %v1111 = vpow.pop %v1110
    %v1112 = vmul.f32 %v1103, 1.442695
    %v1113 = vpow.pop %v1112
    %v1114 = vmul.f32 %v1104, 1.442695
    %v1115 = vpow.pop %v1114
    %v1116 = vmul.f32 %v1105, 1.442695
    %v1117 = vpow.pop %v1116
    %v1118 = vmul.f32 %v1106, 1.442695
    %v1119 = vpow.pop %v1118
    %v1120 = vmul.f32 %v1107, 1.442695
    %v1121 = vpow.pop %v1120
    %v1122 = vmul.f32 %v1108, 1.442695
    %v1123 = vpow.pop %v1122
    %v1124 = vmul.f32 %v1109, 1.442695
    %v1125 = vpow.pop %v1124
    %v1126 = vsel %vm1077, %v1111, 0.0
    %1127 = vadd.xlane.f32.xlu0 %v1126
    %v1128 = vpop.xlane.xlu0 %1127
    %v1129 = vsel %vm1077, %v1113, 0.0
    %1130 = vadd.xlane.f32.xlu0 %v1129
    %v1131 = vpop.xlane.xlu0 %1130
    %v1132 = vsel %vm1077, %v1115, 0.0
    %1133 = vadd.xlane.f32.xlu0 %v1132
    %v1134 = vpop.xlane.xlu0 %1133
    %v1135 = vsel %vm1077, %v1117, 0.0
    %1136 = vadd.xlane.f32.xlu0 %v1135
    %v1137 = vpop.xlane.xlu0 %1136
    %v1138 = vsel %vm1077, %v1119, 0.0
    %1139 = vadd.xlane.f32.xlu0 %v1138
    %v1140 = vpop.xlane.xlu0 %1139
    %v1141 = vsel %vm1077, %v1121, 0.0
    %1142 = vadd.xlane.f32.xlu0 %v1141
    %v1143 = vpop.xlane.xlu0 %1142
    %v1144 = vsel %vm1077, %v1123, 0.0
    %1145 = vadd.xlane.f32.xlu0 %v1144
    %v1146 = vpop.xlane.xlu0 %1145
    %v1147 = vsel %vm1077, %v1125, 0.0
    %1148 = vadd.xlane.f32.xlu0 %v1147
    %v1149 = vpop.xlane.xlu0 %1148
    %v1150 = vrcp.pop %v1128
    %v1151 = vrcp.pop %v1131
    %v1152 = vrcp.pop %v1134
    %v1153 = vrcp.pop %v1137
    %v1154 = vrcp.pop %v1140
    %v1155 = vrcp.pop %v1143
    %v1156 = vrcp.pop %v1146
    %v1157 = vrcp.pop %v1149
    %v1158 = vmul.f32 %v1111, %v1150
    %v1159 = vmul.f32 %v1113, %v1151
    %v1160 = vmul.f32 %v1115, %v1152
    %v1161 = vmul.f32 %v1117, %v1153
    %v1162 = vmul.f32 %v1119, %v1154
    %v1163 = vmul.f32 %v1121, %v1155
    %v1164 = vmul.f32 %v1123, %v1156
    %v1165 = vmul.f32 %v1125, %v1157
    %v1166 = vcombine.low %v341, %v363
    %v1169 = vsel %vm1077, %v1158, 0
    %vm1171 = vcmask 1043456
    %v1172 = vsel %vm1171, %v346, 0
    %1174 = vmatprep.subr.mxu0 0.0
    %1175 = vmatpush1.msra.mxu0 %v1166
    %1176 = vmatprep.subr.mxu0 0.0
    %1177 = vmatpush1.msra.mxu0 %v1172
    %1178 = vmatprep.subr.mxu0 0.0
    %1179 = vmatpush1.msra.mxu0 0.0
    %1180 = vmatprep.subr.mxu0 0.0
    %1181 = vmatpush1.msra.mxu0 0.0
    %1182 = vmatprep.subr.mxu0 0.0
    %1183 = vmatpush1.msra.mxu0 0.0
    %1184 = vmatprep.subr.mxu0 0.0
    %1185 = vmatpush1.msra.mxu0 0.0
    %1186 = vmatprep.subr.mxu0 0.0
    %1187 = vmatpush1.msra.mxu0 0.0
    %1188 = vmatprep.subr.mxu0 0.0
    %1189 = vmatpush1.msra.mxu0 0.0
    %1190 = vmatprep.subr.mxu0 0.0
    %1191 = vmatpush1.msra.mxu0 0.0
    %1192 = vmatprep.subr.mxu0 0.0
    %1193 = vmatpush1.msra.mxu0 0.0
    %1194 = vmatprep.subr.mxu0 0.0
    %1195 = vmatpush1.msra.mxu0 0.0
    %1196 = vmatprep.subr.mxu0 0.0
    %1197 = vmatpush1.msra.mxu0 0.0
    %1198 = vmatprep.subr.mxu0 0.0
    %1199 = vmatpush1.msra.mxu0 0.0
    %1200 = vmatprep.subr.mxu0 0.0
    %1201 = vmatpush1.msra.mxu0 0.0
    %1202 = vmatprep.subr.mxu0 0.0
    %1203 = vmatpush1.msra.mxu0 0.0
    %1204 = vmatprep.subr.mxu0 0.0
    %1205 = vmatpush1.msra.mxu0 0.0
    %1206 = vmatprep.subr.mxu0 0.0
    %1207 = vmatpush1.msra.mxu0 0.0
    %1208 = vmatprep.subr.mxu0 0.0
    %1209 = vmatpush1.msra.mxu0 0.0
    %1210 = vmatprep.subr.mxu0 0.0
    %1211 = vmatpush1.msra.mxu0 0.0
    %1212 = vmatprep.subr.mxu0 0.0
    %1213 = vmatpush1.msra.mxu0 0.0
    %1214 = vmatprep.subr.mxu0 0.0
    %1215 = vmatpush1.msra.mxu0 0.0
    %1216 = vmatprep.subr.mxu0 0.0
    %1217 = vmatpush1.msra.mxu0 0.0
    %1218 = vmatprep.subr.mxu0 0.0
    %1219 = vmatpush1.msra.mxu0 0.0
    %1220 = vmatprep.subr.mxu0 0.0
    %1221 = vmatpush1.msra.mxu0 0.0
    %1222 = vmatprep.subr.mxu0 0.0
    %1223 = vmatpush1.msra.mxu0 0.0
    %1224 = vmatprep.subr.mxu0 0.0
    %1225 = vmatpush1.msra.mxu0 0.0
    %1226 = vmatprep.subr.mxu0 0.0
    %1227 = vmatpush1.msra.mxu0 0.0
    %1228 = vmatprep.subr.mxu0 0.0
    %1229 = vmatpush1.msra.mxu0 0.0
    %1230 = vmatprep.subr.mxu0 0.0
    %1231 = vmatpush1.msra.mxu0 0.0
    %1232 = vmatprep.subr.mxu0 0.0
    %1233 = vmatpush1.msra.mxu0 0.0
    %1234 = vmatprep.subr.mxu0 0.0
    %1235 = vmatpush1.msra.mxu0 0.0
    %1236 = vmatprep.subr.mxu0 0.0
    %1237 = vmatpush1.msra.mxu0 0.0
    %1238 = vmatprep.mubr.f32.mxu0 0.0
    %1239 = vmatmul.mubr.f32.gmra.mrb[0].mxu0 %v1169
    %v1240 = vpop.f32.mrb[0].mxu0
    %v1241 = vadd.f32 0.0, %v1240
    %v1242 = vpop.f32.mrb[0].mxu0
    %1243 = vdwg.mxu0
    %v1244 = vcombine.low %v364, %v351
    %v1247 = vsel %vm1077, %v1159, 0
    %v1249 = vsel %vm1171, %v365, 0
    %1251 = vmatprep.subr.mxu0 0.0
    %1252 = vmatpush1.msra.mxu0 %v1244
    %1253 = vmatprep.subr.mxu0 0.0
    %1254 = vmatpush1.msra.mxu0 %v1249
    %1255 = vmatprep.subr.mxu0 0.0
    %1256 = vmatpush1.msra.mxu0 0.0
    %1257 = vmatprep.subr.mxu0 0.0
    %1258 = vmatpush1.msra.mxu0 0.0
    %1259 = vmatprep.subr.mxu0 0.0
    %1260 = vmatpush1.msra.mxu0 0.0
    %1261 = vmatprep.subr.mxu0 0.0
    %1262 = vmatpush1.msra.mxu0 0.0
    %1263 = vmatprep.subr.mxu0 0.0
    %1264 = vmatpush1.msra.mxu0 0.0
    %1265 = vmatprep.subr.mxu0 0.0
    %1266 = vmatpush1.msra.mxu0 0.0
    %1267 = vmatprep.subr.mxu0 0.0
    %1268 = vmatpush1.msra.mxu0 0.0
    %1269 = vmatprep.subr.mxu0 0.0
    %1270 = vmatpush1.msra.mxu0 0.0
    %1271 = vmatprep.subr.mxu0 0.0
    %1272 = vmatpush1.msra.mxu0 0.0
    %1273 = vmatprep.subr.mxu0 0.0
    %1274 = vmatpush1.msra.mxu0 0.0
    %1275 = vmatprep.subr.mxu0 0.0
    %1276 = vmatpush1.msra.mxu0 0.0
    %1277 = vmatprep.subr.mxu0 0.0
    %1278 = vmatpush1.msra.mxu0 0.0
    %1279 = vmatprep.subr.mxu0 0.0
    %1280 = vmatpush1.msra.mxu0 0.0
    %1281 = vmatprep.subr.mxu0 0.0
    %1282 = vmatpush1.msra.mxu0 0.0
    %1283 = vmatprep.subr.mxu0 0.0
    %1284 = vmatpush1.msra.mxu0 0.0
    %1285 = vmatprep.subr.mxu0 0.0
    %1286 = vmatpush1.msra.mxu0 0.0
    %1287 = vmatprep.subr.mxu0 0.0
    %1288 = vmatpush1.msra.mxu0 0.0
    %1289 = vmatprep.subr.mxu0 0.0
    %1290 = vmatpush1.msra.mxu0 0.0
    %1291 = vmatprep.subr.mxu0 0.0
    %1292 = vmatpush1.msra.mxu0 0.0
    %1293 = vmatprep.subr.mxu0 0.0
    %1294 = vmatpush1.msra.mxu0 0.0
    %1295 = vmatprep.subr.mxu0 0.0
    %1296 = vmatpush1.msra.mxu0 0.0
    %1297 = vmatprep.subr.mxu0 0.0
    %1298 = vmatpush1.msra.mxu0 0.0
    %1299 = vmatprep.subr.mxu0 0.0
    %1300 = vmatpush1.msra.mxu0 0.0
    %1301 = vmatprep.subr.mxu0 0.0
    %1302 = vmatpush1.msra.mxu0 0.0
    %1303 = vmatprep.subr.mxu0 0.0
    %1304 = vmatpush1.msra.mxu0 0.0
    %1305 = vmatprep.subr.mxu0 0.0
    %1306 = vmatpush1.msra.mxu0 0.0
    %1307 = vmatprep.subr.mxu0 0.0
    %1308 = vmatpush1.msra.mxu0 0.0
    %1309 = vmatprep.subr.mxu0 0.0
    %1310 = vmatpush1.msra.mxu0 0.0
    %1311 = vmatprep.subr.mxu0 0.0
    %1312 = vmatpush1.msra.mxu0 0.0
    %1313 = vmatprep.subr.mxu0 0.0
    %1314 = vmatpush1.msra.mxu0 0.0
    %1315 = vmatprep.mubr.f32.mxu0 0.0
    %1316 = vmatmul.mubr.f32.gmra.mrb[0].mxu0 %v1247
    %v1317 = vpop.f32.mrb[0].mxu0
    %v1318 = vadd.f32 0.0, %v1317
    %v1319 = vpop.f32.mrb[0].mxu0
    %1320 = vdwg.mxu0
    %v1321 = vcombine.low %v417, %v419
    %v1324 = vsel %vm1077, %v1160, 0
    %v1326 = vsel %vm1171, %v421, 0
    %1328 = vmatprep.subr.mxu0 0.0
    %1329 = vmatpush1.msra.mxu0 %v1321
    %1330 = vmatprep.subr.mxu0 0.0
    %1331 = vmatpush1.msra.mxu0 %v1326
    %1332 = vmatprep.subr.mxu0 0.0
    %1333 = vmatpush1.msra.mxu0 0.0
    %1334 = vmatprep.subr.mxu0 0.0
    %1335 = vmatpush1.msra.mxu0 0.0
    %1336 = vmatprep.subr.mxu0 0.0
    %1337 = vmatpush1.msra.mxu0 0.0
    %1338 = vmatprep.subr.mxu0 0.0
    %1339 = vmatpush1.msra.mxu0 0.0
    %1340 = vmatprep.subr.mxu0 0.0
    %1341 = vmatpush1.msra.mxu0 0.0
    %1342 = vmatprep.subr.mxu0 0.0
    %1343 = vmatpush1.msra.mxu0 0.0
    %1344 = vmatprep.subr.mxu0 0.0
    %1345 = vmatpush1.msra.mxu0 0.0
    %1346 = vmatprep.subr.mxu0 0.0
    %1347 = vmatpush1.msra.mxu0 0.0
    %1348 = vmatprep.subr.mxu0 0.0
    %1349 = vmatpush1.msra.mxu0 0.0
    %1350 = vmatprep.subr.mxu0 0.0
    %1351 = vmatpush1.msra.mxu0 0.0
    %1352 = vmatprep.subr.mxu0 0.0
    %1353 = vmatpush1.msra.mxu0 0.0
    %1354 = vmatprep.subr.mxu0 0.0
    %1355 = vmatpush1.msra.mxu0 0.0
    %1356 = vmatprep.subr.mxu0 0.0
    %1357 = vmatpush1.msra.mxu0 0.0
    %1358 = vmatprep.subr.mxu0 0.0
    %1359 = vmatpush1.msra.mxu0 0.0
    %1360 = vmatprep.subr.mxu0 0.0
    %1361 = vmatpush1.msra.mxu0 0.0
    %1362 = vmatprep.subr.mxu0 0.0
    %1363 = vmatpush1.msra.mxu0 0.0
    %1364 = vmatprep.subr.mxu0 0.0
    %1365 = vmatpush1.msra.mxu0 0.0
    %1366 = vmatprep.subr.mxu0 0.0
    %1367 = vmatpush1.msra.mxu0 0.0
    %1368 = vmatprep.subr.mxu0 0.0
    %1369 = vmatpush1.msra.mxu0 0.0
    %1370 = vmatprep.subr.mxu0 0.0
    %1371 = vmatpush1.msra.mxu0 0.0
    %1372 = vmatprep.subr.mxu0 0.0
    %1373 = vmatpush1.msra.mxu0 0.0
    %1374 = vmatprep.subr.mxu0 0.0
    %1375 = vmatpush1.msra.mxu0 0.0
    %1376 = vmatprep.subr.mxu0 0.0
    %1377 = vmatpush1.msra.mxu0 0.0
    %1378 = vmatprep.subr.mxu0 0.0
    %1379 = vmatpush1.msra.mxu0 0.0
    %1380 = vmatprep.subr.mxu0 0.0
    %1381 = vmatpush1.msra.mxu0 0.0
    %1382 = vmatprep.subr.mxu0 0.0
    %1383 = vmatpush1.msra.mxu0 0.0
    %1384 = vmatprep.subr.mxu0 0.0
    %1385 = vmatpush1.msra.mxu0 0.0
    %1386 = vmatprep.subr.mxu0 0.0
    %1387 = vmatpush1.msra.mxu0 0.0
    %1388 = vmatprep.subr.mxu0 0.0
    %1389 = vmatpush1.msra.mxu0 0.0
    %1390 = vmatprep.subr.mxu0 0.0
    %1391 = vmatpush1.msra.mxu0 0.0
    %1392 = vmatprep.mubr.f32.mxu0 0.0
    %1393 = vmatmul.mubr.f32.gmra.mrb[0].mxu0 %v1324
    %v1394 = vpop.f32.mrb[0].mxu0
    %v1395 = vadd.f32 0.0, %v1394
    %v1396 = vpop.f32.mrb[0].mxu0
    %1397 = vdwg.mxu0
    %v1398 = vcombine.low %v423, %v425
    %v1401 = vsel %vm1077, %v1161, 0
    %v1403 = vsel %vm1171, %v427, 0
    %1405 = vmatprep.subr.mxu0 0.0
    %1406 = vmatpush1.msra.mxu0 %v1398
    %1407 = vmatprep.subr.mxu0 0.0
    %1408 = vmatpush1.msra.mxu0 %v1403
    %1409 = vmatprep.subr.mxu0 0.0
    %1410 = vmatpush1.msra.mxu0 0.0
    %1411 = vmatprep.subr.mxu0 0.0
    %1412 = vmatpush1.msra.mxu0 0.0
    %1413 = vmatprep.subr.mxu0 0.0
    %1414 = vmatpush1.msra.mxu0 0.0
    %1415 = vmatprep.subr.mxu0 0.0
    %1416 = vmatpush1.msra.mxu0 0.0
    %1417 = vmatprep.subr.mxu0 0.0
    %1418 = vmatpush1.msra.mxu0 0.0
    %1419 = vmatprep.subr.mxu0 0.0
    %1420 = vmatpush1.msra.mxu0 0.0
    %1421 = vmatprep.subr.mxu0 0.0
    %1422 = vmatpush1.msra.mxu0 0.0
    %1423 = vmatprep.subr.mxu0 0.0
    %1424 = vmatpush1.msra.mxu0 0.0
    %1425 = vmatprep.subr.mxu0 0.0
    %1426 = vmatpush1.msra.mxu0 0.0
    %1427 = vmatprep.subr.mxu0 0.0
    %1428 = vmatpush1.msra.mxu0 0.0
    %1429 = vmatprep.subr.mxu0 0.0
    %1430 = vmatpush1.msra.mxu0 0.0
    %1431 = vmatprep.subr.mxu0 0.0
    %1432 = vmatpush1.msra.mxu0 0.0
    %1433 = vmatprep.subr.mxu0 0.0
    %1434 = vmatpush1.msra.mxu0 0.0
    %1435 = vmatprep.subr.mxu0 0.0
    %1436 = vmatpush1.msra.mxu0 0.0
    %1437 = vmatprep.subr.mxu0 0.0
    %1438 = vmatpush1.msra.mxu0 0.0
    %1439 = vmatprep.subr.mxu0 0.0
    %1440 = vmatpush1.msra.mxu0 0.0
    %1441 = vmatprep.subr.mxu0 0.0
    %1442 = vmatpush1.msra.mxu0 0.0
    %1443 = vmatprep.subr.mxu0 0.0
    %1444 = vmatpush1.msra.mxu0 0.0
    %1445 = vmatprep.subr.mxu0 0.0
    %1446 = vmatpush1.msra.mxu0 0.0
    %1447 = vmatprep.subr.mxu0 0.0
    %1448 = vmatpush1.msra.mxu0 0.0
    %1449 = vmatprep.subr.mxu0 0.0
    %1450 = vmatpush1.msra.mxu0 0.0
    %1451 = vmatprep.subr.mxu0 0.0
    %1452 = vmatpush1.msra.mxu0 0.0
    %1453 = vmatprep.subr.mxu0 0.0
    %1454 = vmatpush1.msra.mxu0 0.0
    %1455 = vmatprep.subr.mxu0 0.0
    %1456 = vmatpush1.msra.mxu0 0.0
    %1457 = vmatprep.subr.mxu0 0.0
    %1458 = vmatpush1.msra.mxu0 0.0
    %1459 = vmatprep.subr.mxu0 0.0
    %1460 = vmatpush1.msra.mxu0 0.0
    %1461 = vmatprep.subr.mxu0 0.0
    %1462 = vmatpush1.msra.mxu0 0.0
    %1463 = vmatprep.subr.mxu0 0.0
    %1464 = vmatpush1.msra.mxu0 0.0
    %1465 = vmatprep.subr.mxu0 0.0
    %1466 = vmatpush1.msra.mxu0 0.0
    %1467 = vmatprep.subr.mxu0 0.0
    %1468 = vmatpush1.msra.mxu0 0.0
    %1469 = vmatprep.mubr.f32.mxu0 0.0
    %1470 = vmatmul.mubr.f32.gmra.mrb[0].mxu0 %v1401
    %v1471 = vpop.f32.mrb[0].mxu0
    %v1472 = vadd.f32 0.0, %v1471
    %v1473 = vpop.f32.mrb[0].mxu0
    %1474 = vdwg.mxu0
    %v1475 = vcombine.low %v429, %v431
    %v1478 = vsel %vm1077, %v1162, 0
    %v1480 = vsel %vm1171, %v433, 0
    %1482 = vmatprep.subr.mxu0 0.0
    %1483 = vmatpush1.msra.mxu0 %v1475
    %1484 = vmatprep.subr.mxu0 0.0
    %1485 = vmatpush1.msra.mxu0 %v1480
    %1486 = vmatprep.subr.mxu0 0.0
    %1487 = vmatpush1.msra.mxu0 0.0
    %1488 = vmatprep.subr.mxu0 0.0
    %1489 = vmatpush1.msra.mxu0 0.0
    %1490 = vmatprep.subr.mxu0 0.0
    %1491 = vmatpush1.msra.mxu0 0.0
    %1492 = vmatprep.subr.mxu0 0.0
    %1493 = vmatpush1.msra.mxu0 0.0
    %1494 = vmatprep.subr.mxu0 0.0
    %1495 = vmatpush1.msra.mxu0 0.0
    %1496 = vmatprep.subr.mxu0 0.0
    %1497 = vmatpush1.msra.mxu0 0.0
    %1498 = vmatprep.subr.mxu0 0.0
    %1499 = vmatpush1.msra.mxu0 0.0
    %1500 = vmatprep.subr.mxu0 0.0
    %1501 = vmatpush1.msra.mxu0 0.0
    %1502 = vmatprep.subr.mxu0 0.0
    %1503 = vmatpush1.msra.mxu0 0.0
    %1504 = vmatprep.subr.mxu0 0.0
    %1505 = vmatpush1.msra.mxu0 0.0
    %1506 = vmatprep.subr.mxu0 0.0
    %1507 = vmatpush1.msra.mxu0 0.0
    %1508 = vmatprep.subr.mxu0 0.0
    %1509 = vmatpush1.msra.mxu0 0.0
    %1510 = vmatprep.subr.mxu0 0.0
    %1511 = vmatpush1.msra.mxu0 0.0
    %1512 = vmatprep.subr.mxu0 0.0
    %1513 = vmatpush1.msra.mxu0 0.0
    %1514 = vmatprep.subr.mxu0 0.0
    %1515 = vmatpush1.msra.mxu0 0.0
    %1516 = vmatprep.subr.mxu0 0.0
    %1517 = vmatpush1.msra.mxu0 0.0
    %1518 = vmatprep.subr.mxu0 0.0
    %1519 = vmatpush1.msra.mxu0 0.0
    %1520 = vmatprep.subr.mxu0 0.0
    %1521 = vmatpush1.msra.mxu0 0.0
    %1522 = vmatprep.subr.mxu0 0.0
    %1523 = vmatpush1.msra.mxu0 0.0
    %1524 = vmatprep.subr.mxu0 0.0
    %1525 = vmatpush1.msra.mxu0 0.0
    %1526 = vmatprep.subr.mxu0 0.0
    %1527 = vmatpush1.msra.mxu0 0.0
    %1528 = vmatprep.subr.mxu0 0.0
    %1529 = vmatpush1.msra.mxu0 0.0
    %1530 = vmatprep.subr.mxu0 0.0
    %1531 = vmatpush1.msra.mxu0 0.0
    %1532 = vmatprep.subr.mxu0 0.0
    %1533 = vmatpush1.msra.mxu0 0.0
    %1534 = vmatprep.subr.mxu0 0.0
    %1535 = vmatpush1.msra.mxu0 0.0
    %1536 = vmatprep.subr.mxu0 0.0
    %1537 = vmatpush1.msra.mxu0 0.0
    %1538 = vmatprep.subr.mxu0 0.0
    %1539 = vmatpush1.msra.mxu0 0.0
    %1540 = vmatprep.subr.mxu0 0.0
    %1541 = vmatpush1.msra.mxu0 0.0
    %1542 = vmatprep.subr.mxu0 0.0
    %1543 = vmatpush1.msra.mxu0 0.0
    %1544 = vmatprep.subr.mxu0 0.0
    %1545 = vmatpush1.msra.mxu0 0.0
    %1546 = vmatprep.mubr.f32.mxu0 0.0
    %1547 = vmatmul.mubr.f32.gmra.mrb[0].mxu0 %v1478
    %v1548 = vpop.f32.mrb[0].mxu0
    %v1549 = vadd.f32 0.0, %v1548
    %v1550 = vpop.f32.mrb[0].mxu0
    %1551 = vdwg.mxu0
    %v1552 = vcombine.low %v435, %v437
    %v1555 = vsel %vm1077, %v1163, 0
    %v1557 = vsel %vm1171, %v439, 0
    %1559 = vmatprep.subr.mxu0 0.0
    %1560 = vmatpush1.msra.mxu0 %v1552
    %1561 = vmatprep.subr.mxu0 0.0
    %1562 = vmatpush1.msra.mxu0 %v1557
    %1563 = vmatprep.subr.mxu0 0.0
    %1564 = vmatpush1.msra.mxu0 0.0
    %1565 = vmatprep.subr.mxu0 0.0
    %1566 = vmatpush1.msra.mxu0 0.0
    %1567 = vmatprep.subr.mxu0 0.0
    %1568 = vmatpush1.msra.mxu0 0.0
    %1569 = vmatprep.subr.mxu0 0.0
    %1570 = vmatpush1.msra.mxu0 0.0
    %1571 = vmatprep.subr.mxu0 0.0
    %1572 = vmatpush1.msra.mxu0 0.0
    %1573 = vmatprep.subr.mxu0 0.0
    %1574 = vmatpush1.msra.mxu0 0.0
    %1575 = vmatprep.subr.mxu0 0.0
    %1576 = vmatpush1.msra.mxu0 0.0
    %1577 = vmatprep.subr.mxu0 0.0
    %1578 = vmatpush1.msra.mxu0 0.0
    %1579 = vmatprep.subr.mxu0 0.0
    %1580 = vmatpush1.msra.mxu0 0.0
    %1581 = vmatprep.subr.mxu0 0.0
    %1582 = vmatpush1.msra.mxu0 0.0
    %1583 = vmatprep.subr.mxu0 0.0
    %1584 = vmatpush1.msra.mxu0 0.0
    %1585 = vmatprep.subr.mxu0 0.0
    %1586 = vmatpush1.msra.mxu0 0.0
    %1587 = vmatprep.subr.mxu0 0.0
    %1588 = vmatpush1.msra.mxu0 0.0
    %1589 = vmatprep.subr.mxu0 0.0
    %1590 = vmatpush1.msra.mxu0 0.0
    %1591 = vmatprep.subr.mxu0 0.0
    %1592 = vmatpush1.msra.mxu0 0.0
    %1593 = vmatprep.subr.mxu0 0.0
    %1594 = vmatpush1.msra.mxu0 0.0
    %1595 = vmatprep.subr.mxu0 0.0
    %1596 = vmatpush1.msra.mxu0 0.0
    %1597 = vmatprep.subr.mxu0 0.0
    %1598 = vmatpush1.msra.mxu0 0.0
    %1599 = vmatprep.subr.mxu0 0.0
    %1600 = vmatpush1.msra.mxu0 0.0
    %1601 = vmatprep.subr.mxu0 0.0
    %1602 = vmatpush1.msra.mxu0 0.0
    %1603 = vmatprep.subr.mxu0 0.0
    %1604 = vmatpush1.msra.mxu0 0.0
    %1605 = vmatprep.subr.mxu0 0.0
    %1606 = vmatpush1.msra.mxu0 0.0
    %1607 = vmatprep.subr.mxu0 0.0
    %1608 = vmatpush1.msra.mxu0 0.0
    %1609 = vmatprep.subr.mxu0 0.0
    %1610 = vmatpush1.msra.mxu0 0.0
    %1611 = vmatprep.subr.mxu0 0.0
    %1612 = vmatpush1.msra.mxu0 0.0
    %1613 = vmatprep.subr.mxu0 0.0
    %1614 = vmatpush1.msra.mxu0 0.0
    %1615 = vmatprep.subr.mxu0 0.0
    %1616 = vmatpush1.msra.mxu0 0.0
    %1617 = vmatprep.subr.mxu0 0.0
    %1618 = vmatpush1.msra.mxu0 0.0
    %1619 = vmatprep.subr.mxu0 0.0
    %1620 = vmatpush1.msra.mxu0 0.0
    %1621 = vmatprep.subr.mxu0 0.0
    %1622 = vmatpush1.msra.mxu0 0.0
    %1623 = vmatprep.mubr.f32.mxu0 0.0
    %1624 = vmatmul.mubr.f32.gmra.mrb[0].mxu0 %v1555
    %v1625 = vpop.f32.mrb[0].mxu0
    %v1626 = vadd.f32 0.0, %v1625
    %v1627 = vpop.f32.mrb[0].mxu0
    %1628 = vdwg.mxu0
    %v1629 = vcombine.low %v441, %v443
    %v1632 = vsel %vm1077, %v1164, 0
    %v1634 = vsel %vm1171, %v445, 0
    %1636 = vmatprep.subr.mxu0 0.0
    %1637 = vmatpush1.msra.mxu0 %v1629
    %1638 = vmatprep.subr.mxu0 0.0
    %1639 = vmatpush1.msra.mxu0 %v1634
    %1640 = vmatprep.subr.mxu0 0.0
    %1641 = vmatpush1.msra.mxu0 0.0
    %1642 = vmatprep.subr.mxu0 0.0
    %1643 = vmatpush1.msra.mxu0 0.0
    %1644 = vmatprep.subr.mxu0 0.0
    %1645 = vmatpush1.msra.mxu0 0.0
    %1646 = vmatprep.subr.mxu0 0.0
    %1647 = vmatpush1.msra.mxu0 0.0
    %1648 = vmatprep.subr.mxu0 0.0
    %1649 = vmatpush1.msra.mxu0 0.0
    %1650 = vmatprep.subr.mxu0 0.0
    %1651 = vmatpush1.msra.mxu0 0.0
    %1652 = vmatprep.subr.mxu0 0.0
    %1653 = vmatpush1.msra.mxu0 0.0
    %1654 = vmatprep.subr.mxu0 0.0
    %1655 = vmatpush1.msra.mxu0 0.0
    %1656 = vmatprep.subr.mxu0 0.0
    %1657 = vmatpush1.msra.mxu0 0.0
    %1658 = vmatprep.subr.mxu0 0.0
    %1659 = vmatpush1.msra.mxu0 0.0
    %1660 = vmatprep.subr.mxu0 0.0
    %1661 = vmatpush1.msra.mxu0 0.0
    %1662 = vmatprep.subr.mxu0 0.0
    %1663 = vmatpush1.msra.mxu0 0.0
    %1664 = vmatprep.subr.mxu0 0.0
    %1665 = vmatpush1.msra.mxu0 0.0
    %1666 = vmatprep.subr.mxu0 0.0
    %1667 = vmatpush1.msra.mxu0 0.0
    %1668 = vmatprep.subr.mxu0 0.0
    %1669 = vmatpush1.msra.mxu0 0.0
    %1670 = vmatprep.subr.mxu0 0.0
    %1671 = vmatpush1.msra.mxu0 0.0
    %1672 = vmatprep.subr.mxu0 0.0
    %1673 = vmatpush1.msra.mxu0 0.0
    %1674 = vmatprep.subr.mxu0 0.0
    %1675 = vmatpush1.msra.mxu0 0.0
    %1676 = vmatprep.subr.mxu0 0.0
    %1677 = vmatpush1.msra.mxu0 0.0
    %1678 = vmatprep.subr.mxu0 0.0
    %1679 = vmatpush1.msra.mxu0 0.0
    %1680 = vmatprep.subr.mxu0 0.0
    %1681 = vmatpush1.msra.mxu0 0.0
    %1682 = vmatprep.subr.mxu0 0.0
    %1683 = vmatpush1.msra.mxu0 0.0
    %1684 = vmatprep.subr.mxu0 0.0
    %1685 = vmatpush1.msra.mxu0 0.0
    %1686 = vmatprep.subr.mxu0 0.0
    %1687 = vmatpush1.msra.mxu0 0.0
    %1688 = vmatprep.subr.mxu0 0.0
    %1689 = vmatpush1.msra.mxu0 0.0
    %1690 = vmatprep.subr.mxu0 0.0
    %1691 = vmatpush1.msra.mxu0 0.0
    %1692 = vmatprep.subr.mxu0 0.0
    %1693 = vmatpush1.msra.mxu0 0.0
    %1694 = vmatprep.subr.mxu0 0.0
    %1695 = vmatpush1.msra.mxu0 0.0
    %1696 = vmatprep.subr.mxu0 0.0
    %1697 = vmatpush1.msra.mxu0 0.0
    %1698 = vmatprep.subr.mxu0 0.0
    %1699 = vmatpush1.msra.mxu0 0.0
    %1700 = vmatprep.mubr.f32.mxu0 0.0
    %1701 = vmatmul.mubr.f32.gmra.mrb[0].mxu0 %v1632
    %v1702 = vpop.f32.mrb[0].mxu0
    %v1703 = vadd.f32 0.0, %v1702
    %v1704 = vpop.f32.mrb[0].mxu0
    %1705 = vdwg.mxu0
    %v1706 = vcombine.low %v447, %v449
    %v1709 = vsel %vm1077, %v1165, 0
    %v1711 = vsel %vm1171, %v451, 0
    %1713 = vmatprep.subr.mxu0 0.0
    %1714 = vmatpush1.msra.mxu0 %v1706
    %1715 = vmatprep.subr.mxu0 0.0
    %1716 = vmatpush1.msra.mxu0 %v1711
    %1717 = vmatprep.subr.mxu0 0.0
    %1718 = vmatpush1.msra.mxu0 0.0
    %1719 = vmatprep.subr.mxu0 0.0
    %1720 = vmatpush1.msra.mxu0 0.0
    %1721 = vmatprep.subr.mxu0 0.0
    %1722 = vmatpush1.msra.mxu0 0.0
    %1723 = vmatprep.subr.mxu0 0.0
    %1724 = vmatpush1.msra.mxu0 0.0
    %1725 = vmatprep.subr.mxu0 0.0
    %1726 = vmatpush1.msra.mxu0 0.0
    %1727 = vmatprep.subr.mxu0 0.0
    %1728 = vmatpush1.msra.mxu0 0.0
    %1729 = vmatprep.subr.mxu0 0.0
    %1730 = vmatpush1.msra.mxu0 0.0
    %1731 = vmatprep.subr.mxu0 0.0
    %1732 = vmatpush1.msra.mxu0 0.0
    %1733 = vmatprep.subr.mxu0 0.0
    %1734 = vmatpush1.msra.mxu0 0.0
    %1735 = vmatprep.subr.mxu0 0.0
    %1736 = vmatpush1.msra.mxu0 0.0
    %1737 = vmatprep.subr.mxu0 0.0
    %1738 = vmatpush1.msra.mxu0 0.0
    %1739 = vmatprep.subr.mxu0 0.0
    %1740 = vmatpush1.msra.mxu0 0.0
    %1741 = vmatprep.subr.mxu0 0.0
    %1742 = vmatpush1.msra.mxu0 0.0
    %1743 = vmatprep.subr.mxu0 0.0
    %1744 = vmatpush1.msra.mxu0 0.0
    %1745 = vmatprep.subr.mxu0 0.0
    %1746 = vmatpush1.msra.mxu0 0.0
    %1747 = vmatprep.subr.mxu0 0.0
    %1748 = vmatpush1.msra.mxu0 0.0
    %1749 = vmatprep.subr.mxu0 0.0
    %1750 = vmatpush1.msra.mxu0 0.0
    %1751 = vmatprep.subr.mxu0 0.0
    %1752 = vmatpush1.msra.mxu0 0.0
    %1753 = vmatprep.subr.mxu0 0.0
    %1754 = vmatpush1.msra.mxu0 0.0
    %1755 = vmatprep.subr.mxu0 0.0
    %1756 = vmatpush1.msra.mxu0 0.0
    %1757 = vmatprep.subr.mxu0 0.0
    %1758 = vmatpush1.msra.mxu0 0.0
    %1759 = vmatprep.subr.mxu0 0.0
    %1760 = vmatpush1.msra.mxu0 0.0
    %1761 = vmatprep.subr.mxu0 0.0
    %1762 = vmatpush1.msra.mxu0 0.0
    %1763 = vmatprep.subr.mxu0 0.0
    %1764 = vmatpush1.msra.mxu0 0.0
    %1765 = vmatprep.subr.mxu0 0.0
    %1766 = vmatpush1.msra.mxu0 0.0
    %1767 = vmatprep.subr.mxu0 0.0
    %1768 = vmatpush1.msra.mxu0 0.0
    %1769 = vmatprep.subr.mxu0 0.0
    %1770 = vmatpush1.msra.mxu0 0.0
    %1771 = vmatprep.subr.mxu0 0.0
    %1772 = vmatpush1.msra.mxu0 0.0
    %1773 = vmatprep.subr.mxu0 0.0
    %1774 = vmatpush1.msra.mxu0 0.0
    %1775 = vmatprep.subr.mxu0 0.0
    %1776 = vmatpush1.msra.mxu0 0.0
    %1777 = vmatprep.mubr.f32.mxu0 0.0
    %1778 = vmatmul.mubr.f32.gmra.mrb[0].mxu0 %v1709
    %v1779 = vpop.f32.mrb[0].mxu0
    %v1780 = vadd.f32 0.0, %v1779
    %v1781 = vpop.f32.mrb[0].mxu0
    %1782 = vdwg.mxu0
    %1785 = vrot.lane.b32.xlu0 %v1395, 8
    %v1786 = vpop.permute.xlu0 %1785
    %1787 = vrot.lane.b32.xlu0 %v1472, 8
    %v1788 = vpop.permute.xlu0 %1787
    %1793 = vrot.lane.b32.xlu0 %v1549, 16
    %v1794 = vpop.permute.xlu0 %1793
    %1795 = vrot.lane.b32.xlu0 %v1626, 16
    %v1796 = vpop.permute.xlu0 %1795
    %1801 = vrot.lane.b32.xlu0 %v1703, 24
    %v1802 = vpop.permute.xlu0 %1801
    %1803 = vrot.lane.b32.xlu0 %v1780, 24
    %v1804 = vpop.permute.xlu0 %1803
    %v1807 = vsel %vm453, %v1241, %v1786
    %v1808 = vsel %vm453, %v1318, %v1788
    %vm1809 = vcmask 130048
    %v1810 = vsel %vm1809, %v1807, %v1794
    %v1811 = vsel %vm1809, %v1808, %v1796
    %vm1812 = vcmask 195584
    %v1813 = vsel %vm1812, %v1810, %v1802
    %v1814 = vsel %vm1812, %v1811, %v1804
    %s1815 = scalar_lea.vmem [#allocation2], 96
    %v1816 = vld [vmem:[%s1815] sm:$0xff]
    %v1817 = vld [vmem:[%s1815 + $0x8] sm:$0xff]
    %v1818 = vld [vmem:[%s1815 + $0x10] sm:$0xff]
    %v1819 = vld [vmem:[%s1815 + $0x18] sm:$0xff]
    %s1820 = scalar_lea.vmem %s4, 3
    %v1821 = vld [vmem:[%s1820] sm:$0x1]
    %v1823 = vlaneseq
    %v1824 = vshrl.u32 %v1823, 7
    %v1825 = vsub.s32 0, %v1824
    %v1826 = vrot.slane %v1821, %v1825
    %v1829 = vsel %vm48, %v1813, 0
    %v1832 = vsel %vm48, %v1814, 0
    %1834 = vmatprep.subr.mxu0 0.0
    %1835 = vmatpush1.msra.mxu0 %v1816
    %1836 = vmatprep.subr.mxu0 0.0
    %1837 = vmatpush1.msra.mxu0 %v1817
    %1838 = vmatprep.subr.mxu0 0.0
    %1839 = vmatpush1.msra.mxu0 %v1818
    %1840 = vmatprep.subr.mxu0 0.0
    %1841 = vmatpush1.msra.mxu0 %v1819
    %1842 = vmatprep.subr.mxu0 0.0
    %1843 = vmatpush1.msra.mxu0 0.0
    %1844 = vmatprep.subr.mxu0 0.0
    %1845 = vmatpush1.msra.mxu0 0.0
    %1846 = vmatprep.subr.mxu0 0.0
    %1847 = vmatpush1.msra.mxu0 0.0
    %1848 = vmatprep.subr.mxu0 0.0
    %1849 = vmatpush1.msra.mxu0 0.0
    %1850 = vmatprep.subr.mxu0 0.0
    %1851 = vmatpush1.msra.mxu0 0.0
    %1852 = vmatprep.subr.mxu0 0.0
    %1853 = vmatpush1.msra.mxu0 0.0
    %1854 = vmatprep.subr.mxu0 0.0
    %1855 = vmatpush1.msra.mxu0 0.0
    %1856 = vmatprep.subr.mxu0 0.0
    %1857 = vmatpush1.msra.mxu0 0.0
    %1858 = vmatprep.subr.mxu0 0.0
    %1859 = vmatpush1.msra.mxu0 0.0
    %1860 = vmatprep.subr.mxu0 0.0
    %1861 = vmatpush1.msra.mxu0 0.0
    %1862 = vmatprep.subr.mxu0 0.0
    %1863 = vmatpush1.msra.mxu0 0.0
    %1864 = vmatprep.subr.mxu0 0.0
    %1865 = vmatpush1.msra.mxu0 0.0
    %1866 = vmatprep.subr.mxu0 0.0
    %1867 = vmatpush1.msra.mxu0 0.0
    %1868 = vmatprep.subr.mxu0 0.0
    %1869 = vmatpush1.msra.mxu0 0.0
    %1870 = vmatprep.subr.mxu0 0.0
    %1871 = vmatpush1.msra.mxu0 0.0
    %1872 = vmatprep.subr.mxu0 0.0
    %1873 = vmatpush1.msra.mxu0 0.0
    %1874 = vmatprep.subr.mxu0 0.0
    %1875 = vmatpush1.msra.mxu0 0.0
    %1876 = vmatprep.subr.mxu0 0.0
    %1877 = vmatpush1.msra.mxu0 0.0
    %1878 = vmatprep.subr.mxu0 0.0
    %1879 = vmatpush1.msra.mxu0 0.0
    %1880 = vmatprep.subr.mxu0 0.0
    %1881 = vmatpush1.msra.mxu0 0.0
    %1882 = vmatprep.subr.mxu0 0.0
    %1883 = vmatpush1.msra.mxu0 0.0
    %1884 = vmatprep.subr.mxu0 0.0
    %1885 = vmatpush1.msra.mxu0 0.0
    %1886 = vmatprep.subr.mxu0 0.0
    %1887 = vmatpush1.msra.mxu0 0.0
    %1888 = vmatprep.subr.mxu0 0.0
    %1889 = vmatpush1.msra.mxu0 0.0
    %1890 = vmatprep.subr.mxu0 0.0
    %1891 = vmatpush1.msra.mxu0 0.0
    %1892 = vmatprep.subr.mxu0 0.0
    %1893 = vmatpush1.msra.mxu0 0.0
    %1894 = vmatprep.subr.mxu0 0.0
    %1895 = vmatpush1.msra.mxu0 0.0
    %1896 = vmatprep.subr.mxu0 0.0
    %1897 = vmatpush1.msra.mxu0 0.0
    %1898 = vmatprep.mubr.f32.mxu0 0.0
    %1899 = vmatmul.mubr.f32.gmra.mrb[0].mxu0 %v1829
    %v1900 = vpop.f32.mrb[0].mxu0
    %v1901 = vadd.f32 %v1826, %v1900
    %v1902 = vpop.f32.mrb[0].mxu0
    %1903 = vmatprep.mubr.f32.mxu0 0.0
    %1904 = vmatmul.mubr.f32.gmra.mrb[0].mxu0 %v1832
    %v1905 = vpop.f32.mrb[0].mxu0
    %v1906 = vadd.f32 %v1826, %v1905
    %v1907 = vpop.f32.mrb[0].mxu0
    %1908 = vdwg.mxu0
    %1909 = vst.msk [vmem:[#allocation5] sm:$0xff] %vm48, %v1901
    %1910 = vst.msk [vmem:[#allocation5 + $0x8] sm:$0xff] %vm48, %v1906
    // Predicated region
    $region26: #{tpu_custom_call.1} parent=1 // pred_check
      _
    $region27: #{tpu_custom_call.1} parent=1 // pred_check_branch
      %1912 = sbr.rel (0) target = $region29
    $region28: #{tpu_custom_call.1} parent=1 // pred_region
      %s1914 = ssub.s32 256, 256
      %1915 = vsyncadd [#allocation4], %s1914
      %s1916 = sshll.u32 [#allocation5], 4
      %s1917 = int_to_ptr.vmem [resolvable:$true] %s1916
      %1922 = dma.vmem_to_hbm [thread:$0]  %s1917, 256, %s5, [#allocation4], 128, 128, 8
    $region29: #{tpu_custom_call.1} parent=1 // pred_fallthru
      _
    // Predicated region
    $region30: #{tpu_custom_call.1} parent=1 // pred_check
      _
    $region31: #{tpu_custom_call.1} parent=1 // pred_check_branch
      %1924 = sbr.rel (0) target = $region33
    $region32: #{tpu_custom_call.1} parent=1 // pred_region
      %1925 = dma.done [#allocation4], 256
    $region33: #{tpu_custom_call.1} parent=1 // pred_fallthru
      _
    %1926 = vsyncpa [#allocation3], 1
    %1927 = vsyncpa [#allocation4], 1

</llo_original>
